<compile_context>
chip_gen: v7x
topology: tpu7x:2x2x1
jax: 0.10.0
libtpu: 0.0.40
codegen_flags: <defaults>
</compile_context>

<pallas_src>
import math
import functools

import jax
import jax.numpy as jnp
from jax.experimental import pallas as pl
from jax.experimental.pallas import tpu as pltpu

LOG2 = math.log(2.0)
LOG2PI = math.log(2.0 * math.pi)
LOG_GAMMA_3_2 = math.log(math.gamma(1.5))


# ----------------------------------------------------------------------------
# Pallas kernel
# ----------------------------------------------------------------------------
def _bimm2d_kernel(scal_ref, I_ref, cphase_ref, In_ref, coef_ref, csamp_ref,
                   u_ref, v_ref, out_ref, *, n_phases, n_interfaces, n_mc):
    u = u_ref[...]                      # (TR, 128)
    v = v_ref[...]                      # (TR, 128)

    inv_sn2 = scal_ref[0]               # 1 / sigma_n^2
    inv_var = scal_ref[1]               # 1 / (sigma_n^2 * (1 - rho))

    # ----- sample-invariant per-element quantities (single EUP log) --------
    logv = jnp.log(v)
    ucoef = u * inv_sn2                                    # u / sigma_n^2
    base = logv - 0.5 * (u * ucoef) - (v * v) * inv_var    # shared by all comps

    # ----- interior components (base factored out) -------------------------
    #   interior_k = logv + u*I_k/sn^2 + cphase_k
    interior = [logv + (ucoef * I_ref[k] + cphase_ref[k])
                for k in range(n_phases)]

    # ----- interface components: MC integral over n_mc samples each --------
    # exp(a + log(2*sinh x)) == exp(a + x) - exp(a - x)  with x = 2*v*G/var > 0.
    # The per-group max is taken over (a + x), an upper bound of the true
    # per-sample log value, so every exponent below is <= 0.
    group_m, group_s = [], []
    for j in range(n_interfaces):
        tps, tms = [], []
        for n in range(n_mc):
            idx = j * n_mc + n
            a = ucoef * In_ref[idx] + csamp_ref[idx]
            x = v * coef_ref[idx]
            tps.append(a + x)
            tms.append(a - x)
        mj = tps[0]
        for t in tps[1:]:
            mj = jnp.maximum(mj, t)
        sj = jnp.exp(tps[0] - mj) - jnp.exp(tms[0] - mj)
        for n in range(1, n_mc):
            sj = sj + (jnp.exp(tps[n] - mj) - jnp.exp(tms[n] - mj))
        group_m.append(mj)
        group_s.append(sj)

    # ----- fused mixture combine (one log at the very end) -----------------
    gm = interior[0]
    for c in interior[1:]:
        gm = jnp.maximum(gm, c)
    for mj in group_m:
        gm = jnp.maximum(gm, mj)

    tot = jnp.exp(interior[0] - gm)
    for c in interior[1:]:
        tot = tot + jnp.exp(c - gm)
    for j in range(n_interfaces):
        tot = tot + group_s[j] * jnp.exp(group_m[j] - gm)

    log_p = base + gm + jnp.log(tot)    # (TR, 128)

    # per-tile partial sums, reduced to a lane-dense (8, 128) output block
    tr = log_p.shape[0]
    acc = log_p[0:8]
    for r0 in range(8, tr, 8):
        acc = acc + log_p[r0:r0 + 8]
    out_ref[...] = acc


# ----------------------------------------------------------------------------
# Wrapper: parameter glue + pallas_call
# ----------------------------------------------------------------------------
def prepare_interface_samples(key, I, sigma_b, d, n_mc):
    """Per-interface MC sample points In and their G(I) factors (parameter-only)."""
    # TODO(synk): torch.distributions.Uniform MC sampling has no in-kernel
    # equivalent matching torch's RNG stream; samples are drawn with jax.random
    # in glue (parameter-only, data-independent).
    P = I.shape[0]
    In_list, G_list = [], []
    for a in range(P):
        for b in range(P):
            if float(I[a]) < float(I[b]):
                key, sub = jax.random.split(key)
                Ia, Ib = I[a], I[b]
                eps = jax.random.uniform(sub, (n_mc,), dtype=jnp.float32)
                ux = eps * 2.0 * d * sigma_b - d * sigma_b
                In = (jax.scipy.special.erf(ux / (math.sqrt(2.0) * sigma_b))
                      + 1.0) * 0.5 * (Ib - Ia) + Ia
                G_ = ((Ib - Ia) / jnp.sqrt(2.0 * math.pi * sigma_b ** 2)
                      * jnp.exp(-jax.scipy.special.erfinv(
                          2.0 * (In - Ia) / (Ib - Ia) - 1.0) ** 2))
                In_list.append(In)
                G_list.append(G_)
    return jnp.concatenate(In_list), jnp.concatenate(G_list)


def bimm2d_forward_pallas(u, v, I, log_w, In_flat, G_flat,
                          sigma_n, rho, n_mc, tile_rows=256):
    P = int(I.shape[0])
    S = int(In_flat.shape[0])
    J = S // n_mc
    M = int(u.shape[0])
    assert M % 128 == 0, "M must be a multiple of 128"
    rows = M // 128
    tile_rows = min(tile_rows, rows)
    assert tile_rows % 8 == 0, "tile_rows must be a multiple of 8"
    assert rows % tile_rows == 0, "rows must be a multiple of tile_rows"
    num_tiles = rows // tile_rows

    var = sigma_n ** 2 * (1.0 - rho)
    log_s2 = 0.5 * math.log(var)
    log_sn = math.log(sigma_n)
    inv_sn2 = 1.0 / sigma_n ** 2
    inv_var = 1.0 / var

    I = I.astype(jnp.float32)
    log_w = log_w.astype(jnp.float32)
    In_flat = In_flat.astype(jnp.float32)
    G_flat = G_flat.astype(jnp.float32)

    # precomputed reciprocals (avoid vector divides / EUP recip in kernel)
    scal = jnp.array([inv_sn2, inv_var], dtype=jnp.float32)

    # per-phase folded constants:
    #   logw_k + log2 - log(Gamma(3/2)) - 3 log s2 - log sn - 0.5 log(2 pi)
    #   - I_k^2 / (2 sigma_n^2)
    cphase = (log_w[:P] + LOG2 - LOG_GAMMA_3_2 - 3.0 * log_s2 - log_sn
              - 0.5 * LOG2PI - 0.5 * I * I * inv_sn2).astype(jnp.float32)

    # per-MC-sample folded constants (all data-independent terms of lu + lv,
    # incl. the logsinh/bessel constants and the mixture weight / -log(n_mc)).
    # Note: G > 0 here by construction (uniform_x stays strictly inside
    # [-d*sigma_b, d*sigma_b]), so log(G) is finite at trace time.
    logw_if = jnp.repeat(log_w[P:P + J], n_mc)
    csamp = (logw_if - math.log(n_mc) + 0.5 * LOG2 - 2.0 * log_s2
             - 0.5 * jnp.log(G_flat)
             - 0.5 * jnp.log(2.0 * math.pi * G_flat * inv_var)
             - G_flat * G_flat * inv_var
             - log_sn - 0.5 * LOG2PI
             - 0.5 * In_flat * In_flat * inv_sn2).astype(jnp.float32)
    coef = (2.0 * G_flat * inv_var).astype(jnp.float32)     # x = v * coef

    u2 = u.reshape(rows, 128).astype(jnp.float32)
    v2 = v.reshape(rows, 128).astype(jnp.float32)

    smem = pl.BlockSpec(memory_space=pltpu.MemorySpace.SMEM)
    kernel = functools.partial(_bimm2d_kernel, n_phases=P, n_interfaces=J,
                               n_mc=n_mc)

    partials = pl.pallas_call(
        kernel,
        out_shape=jax.ShapeDtypeStruct((num_tiles * 8, 128), jnp.float32),
        grid=(num_tiles,),
        in_specs=[smem, smem, smem, smem, smem, smem,
                  pl.BlockSpec((tile_rows, 128), lambda i: (i, 0)),
                  pl.BlockSpec((tile_rows, 128), lambda i: (i, 0))],
        out_specs=pl.BlockSpec((8, 128), lambda i: (i, 0)),
        compiler_params=pltpu.CompilerParams(
            dimension_semantics=("parallel",)),
    )(scal, I, cphase, In_flat, coef, csamp, u2, v2)

    # final reduction (and better-conditioned sum) in plain JAX
    return -jnp.sum(partials) / jnp.float32(M)


# ----------------------------------------------------------------------------
# Pure-JAX reference (original formulation, same precomputed MC samples)
# ----------------------------------------------------------------------------
def bimm2d_forward_ref(u, v, I, log_w, In_flat, G_flat, sigma_n, rho, n_mc):
    P = I.shape[0]
    J = In_flat.shape[0] // n_mc
    s2 = sigma_n * math.sqrt(1.0 - rho)
    var = sigma_n ** 2 * (1.0 - rho)

    comps = []
    li = (LOG2 + 2.0 * jnp.log(v)[None, :] - LOG_GAMMA_3_2 - 3.0 * math.log(s2)
          - (v[None, :] / s2) ** 2 - math.log(sigma_n) - 0.5 * LOG2PI
          - 0.5 * ((u[None, :] - I[:, None]) / sigma_n) ** 2)
    comps.append(li)
    for j in range(J):
        In = In_flat[j * n_mc:(j + 1) * n_mc][:, None]
        Gc = G_flat[j * n_mc:(j + 1) * n_mc][:, None]
        lu = (-math.log(sigma_n) - 0.5 * LOG2PI
              - 0.5 * ((u[None, :] - In) / sigma_n) ** 2)
        x = 2.0 * v[None, :] * Gc / var
        s = jnp.sign(x) * x
        lsinh = -LOG2 + s + jnp.log1p(-jnp.exp(-2.0 * s))
        lb = 0.5 * LOG2 - 0.5 * jnp.log(math.pi * x) + lsinh
        lv = (LOG2 - 2.0 * math.log(s2) + 1.5 * jnp.log(v)[None, :]
              - 0.5 * jnp.log(Gc) + lb - (v[None, :] ** 2 + Gc ** 2) / var)
        comps.append((-math.log(n_mc)
                      + jax.scipy.special.logsumexp(lu + lv, axis=0))[None, :])
    log_p = jax.scipy.special.logsumexp(
        jnp.concatenate(comps, 0) + log_w[:, None], axis=0)
    return -jnp.sum(log_p) / u.shape[0]


# ----------------------------------------------------------------------------
if __name__ == "__main__":
    n_phases = 3
    n_interfaces = n_phases * (n_phases - 1) // 2
    n_mc_components = 8
    M = 2048                                 # -> (16, 128) data view

    # deterministic parameter init (== BIMM2D.reset_params)
    I = jnp.linspace(0.0, 1.0, n_phases, dtype=jnp.float32)
    W = jnp.zeros(n_phases + n_interfaces, dtype=jnp.float32)
    sigma_b, sigma_n, d, r = 2.0, 0.1, 2.0, 0.0
    rho = math.tanh(r)
    log_w = jax.nn.log_softmax(W)

    key = jax.random.PRNGKey(0)
    k_u, k_v, k_mc = jax.random.split(key, 3)
    u = jax.random.uniform(k_u, (M,), dtype=jnp.float32,
                           minval=-0.2, maxval=1.2)
    v = jax.random.uniform(k_v, (M,), dtype=jnp.float32,
                           minval=0.02, maxval=0.5)

    In_flat, G_flat = prepare_interface_samples(k_mc, I, sigma_b, d,
                                                n_mc_components)

    loss = bimm2d_forward_pallas(u, v, I, log_w, In_flat, G_flat,
                                 sigma_n, rho, n_mc_components, tile_rows=8)
    loss = jax.block_until_ready(loss)

    loss_ref = bimm2d_forward_ref(u, v, I, log_w, In_flat, G_flat,
                                  sigma_n, rho, n_mc_components)

    assert bool(jnp.isfinite(loss)), "pallas loss not finite"
    rel = abs(float(loss) - float(loss_ref)) / max(1.0, abs(float(loss_ref)))
    assert rel < 1e-3, f"mismatch: pallas={float(loss)} ref={float(loss_ref)}"

    print("KERNEL_OK")
</pallas_src>

<mosaic_0001>
module attributes {stable_mosaic.version = 11 : i64} {
  func.func @_bimm2d_kernel(%arg0: i32, %arg1: memref<2xf32, #tpu.memory_space<smem>>, %arg2: memref<3xf32, #tpu.memory_space<smem>>, %arg3: memref<3xf32, #tpu.memory_space<smem>>, %arg4: memref<24xf32, #tpu.memory_space<smem>>, %arg5: memref<24xf32, #tpu.memory_space<smem>>, %arg6: memref<24xf32, #tpu.memory_space<smem>>, %arg7: memref<8x128xf32, #tpu.memory_space<vmem>>, %arg8: memref<8x128xf32, #tpu.memory_space<vmem>>, %arg9: memref<8x128xf32, #tpu.memory_space<vmem>>) attributes {dimension_semantics = [#tpu.dimension_semantics<parallel>], iteration_bounds = array<i64: 2>, scalar_prefetch = 0 : i64, scratch_operands = 0 : i64, tpu.core_type = #tpu.core_type<tc>, window_params = [{transform_indices = @transform_0, window_bounds = array<i64: 2>}, {transform_indices = @transform_1, window_bounds = array<i64: 3>}, {transform_indices = @transform_2, window_bounds = array<i64: 3>}, {transform_indices = @transform_3, window_bounds = array<i64: 24>}, {transform_indices = @transform_4, window_bounds = array<i64: 24>}, {transform_indices = @transform_5, window_bounds = array<i64: 24>}, {transform_indices = @transform_6, window_bounds = array<i64: 8, 128>}, {transform_indices = @transform_7, window_bounds = array<i64: 8, 128>}, {transform_indices = @transform_8, window_bounds = array<i64: 8, 128>}]} {
    %c0 = arith.constant 0 : index
    %c0_0 = arith.constant 0 : index
    %0 = vector.load %arg7[%c0, %c0_0] : memref<8x128xf32, #tpu.memory_space<vmem>>, vector<8x128xf32>
    %c0_1 = arith.constant 0 : index
    %c0_2 = arith.constant 0 : index
    %1 = vector.load %arg8[%c0_1, %c0_2] : memref<8x128xf32, #tpu.memory_space<vmem>>, vector<8x128xf32>
    %c0_3 = arith.constant 0 : index
    %2 = memref.load %arg1[%c0_3] : memref<2xf32, #tpu.memory_space<smem>>
    %c1 = arith.constant 1 : index
    %3 = memref.load %arg1[%c1] : memref<2xf32, #tpu.memory_space<smem>>
    %4 = math.log %1 : vector<8x128xf32>
    %5 = vector.broadcast %2 : f32 to vector<8x128xf32>
    %6 = arith.mulf %0, %5 : vector<8x128xf32>
    %7 = arith.mulf %0, %6 : vector<8x128xf32>
    %cst = arith.constant 5.000000e-01 : f32
    %8 = vector.broadcast %cst : f32 to vector<8x128xf32>
    %9 = arith.mulf %8, %7 : vector<8x128xf32>
    %10 = arith.subf %4, %9 : vector<8x128xf32>
    %11 = arith.mulf %1, %1 : vector<8x128xf32>
    %12 = vector.broadcast %3 : f32 to vector<8x128xf32>
    %13 = arith.mulf %11, %12 : vector<8x128xf32>
    %14 = arith.subf %10, %13 : vector<8x128xf32>
    %c0_4 = arith.constant 0 : index
    %15 = memref.load %arg2[%c0_4] : memref<3xf32, #tpu.memory_space<smem>>
    %16 = vector.broadcast %15 : f32 to vector<8x128xf32>
    %17 = arith.mulf %6, %16 : vector<8x128xf32>
    %c0_5 = arith.constant 0 : index
    %18 = memref.load %arg3[%c0_5] : memref<3xf32, #tpu.memory_space<smem>>
    %19 = vector.broadcast %18 : f32 to vector<8x128xf32>
    %20 = arith.addf %17, %19 : vector<8x128xf32>
    %21 = arith.addf %4, %20 : vector<8x128xf32>
    %c1_6 = arith.constant 1 : index
    %22 = memref.load %arg2[%c1_6] : memref<3xf32, #tpu.memory_space<smem>>
    %23 = vector.broadcast %22 : f32 to vector<8x128xf32>
    %24 = arith.mulf %6, %23 : vector<8x128xf32>
    %c1_7 = arith.constant 1 : index
    %25 = memref.load %arg3[%c1_7] : memref<3xf32, #tpu.memory_space<smem>>
    %26 = vector.broadcast %25 : f32 to vector<8x128xf32>
    %27 = arith.addf %24, %26 : vector<8x128xf32>
    %28 = arith.addf %4, %27 : vector<8x128xf32>
    %c2 = arith.constant 2 : index
    %29 = memref.load %arg2[%c2] : memref<3xf32, #tpu.memory_space<smem>>
    %30 = vector.broadcast %29 : f32 to vector<8x128xf32>
    %31 = arith.mulf %6, %30 : vector<8x128xf32>
    %c2_8 = arith.constant 2 : index
    %32 = memref.load %arg3[%c2_8] : memref<3xf32, #tpu.memory_space<smem>>
    %33 = vector.broadcast %32 : f32 to vector<8x128xf32>
    %34 = arith.addf %31, %33 : vector<8x128xf32>
    %35 = arith.addf %4, %34 : vector<8x128xf32>
    %c0_9 = arith.constant 0 : index
    %36 = memref.load %arg4[%c0_9] : memref<24xf32, #tpu.memory_space<smem>>
    %37 = vector.broadcast %36 : f32 to vector<8x128xf32>
    %38 = arith.mulf %6, %37 : vector<8x128xf32>
    %c0_10 = arith.constant 0 : index
    %39 = memref.load %arg6[%c0_10] : memref<24xf32, #tpu.memory_space<smem>>
    %40 = vector.broadcast %39 : f32 to vector<8x128xf32>
    %41 = arith.addf %38, %40 : vector<8x128xf32>
    %c0_11 = arith.constant 0 : index
    %42 = memref.load %arg5[%c0_11] : memref<24xf32, #tpu.memory_space<smem>>
    %43 = vector.broadcast %42 : f32 to vector<8x128xf32>
    %44 = arith.mulf %1, %43 : vector<8x128xf32>
    %45 = arith.addf %41, %44 : vector<8x128xf32>
    %46 = arith.subf %41, %44 : vector<8x128xf32>
    %c1_12 = arith.constant 1 : index
    %47 = memref.load %arg4[%c1_12] : memref<24xf32, #tpu.memory_space<smem>>
    %48 = vector.broadcast %47 : f32 to vector<8x128xf32>
    %49 = arith.mulf %6, %48 : vector<8x128xf32>
    %c1_13 = arith.constant 1 : index
    %50 = memref.load %arg6[%c1_13] : memref<24xf32, #tpu.memory_space<smem>>
    %51 = vector.broadcast %50 : f32 to vector<8x128xf32>
    %52 = arith.addf %49, %51 : vector<8x128xf32>
    %c1_14 = arith.constant 1 : index
    %53 = memref.load %arg5[%c1_14] : memref<24xf32, #tpu.memory_space<smem>>
    %54 = vector.broadcast %53 : f32 to vector<8x128xf32>
    %55 = arith.mulf %1, %54 : vector<8x128xf32>
    %56 = arith.addf %52, %55 : vector<8x128xf32>
    %57 = arith.subf %52, %55 : vector<8x128xf32>
    %c2_15 = arith.constant 2 : index
    %58 = memref.load %arg4[%c2_15] : memref<24xf32, #tpu.memory_space<smem>>
    %59 = vector.broadcast %58 : f32 to vector<8x128xf32>
    %60 = arith.mulf %6, %59 : vector<8x128xf32>
    %c2_16 = arith.constant 2 : index
    %61 = memref.load %arg6[%c2_16] : memref<24xf32, #tpu.memory_space<smem>>
    %62 = vector.broadcast %61 : f32 to vector<8x128xf32>
    %63 = arith.addf %60, %62 : vector<8x128xf32>
    %c2_17 = arith.constant 2 : index
    %64 = memref.load %arg5[%c2_17] : memref<24xf32, #tpu.memory_space<smem>>
    %65 = vector.broadcast %64 : f32 to vector<8x128xf32>
    %66 = arith.mulf %1, %65 : vector<8x128xf32>
    %67 = arith.addf %63, %66 : vector<8x128xf32>
    %68 = arith.subf %63, %66 : vector<8x128xf32>
    %c3 = arith.constant 3 : index
    %69 = memref.load %arg4[%c3] : memref<24xf32, #tpu.memory_space<smem>>
    %70 = vector.broadcast %69 : f32 to vector<8x128xf32>
    %71 = arith.mulf %6, %70 : vector<8x128xf32>
    %c3_18 = arith.constant 3 : index
    %72 = memref.load %arg6[%c3_18] : memref<24xf32, #tpu.memory_space<smem>>
    %73 = vector.broadcast %72 : f32 to vector<8x128xf32>
    %74 = arith.addf %71, %73 : vector<8x128xf32>
    %c3_19 = arith.constant 3 : index
    %75 = memref.load %arg5[%c3_19] : memref<24xf32, #tpu.memory_space<smem>>
    %76 = vector.broadcast %75 : f32 to vector<8x128xf32>
    %77 = arith.mulf %1, %76 : vector<8x128xf32>
    %78 = arith.addf %74, %77 : vector<8x128xf32>
    %79 = arith.subf %74, %77 : vector<8x128xf32>
    %c4 = arith.constant 4 : index
    %80 = memref.load %arg4[%c4] : memref<24xf32, #tpu.memory_space<smem>>
    %81 = vector.broadcast %80 : f32 to vector<8x128xf32>
    %82 = arith.mulf %6, %81 : vector<8x128xf32>
    %c4_20 = arith.constant 4 : index
    %83 = memref.load %arg6[%c4_20] : memref<24xf32, #tpu.memory_space<smem>>
    %84 = vector.broadcast %83 : f32 to vector<8x128xf32>
    %85 = arith.addf %82, %84 : vector<8x128xf32>
    %c4_21 = arith.constant 4 : index
    %86 = memref.load %arg5[%c4_21] : memref<24xf32, #tpu.memory_space<smem>>
    %87 = vector.broadcast %86 : f32 to vector<8x128xf32>
    %88 = arith.mulf %1, %87 : vector<8x128xf32>
    %89 = arith.addf %85, %88 : vector<8x128xf32>
    %90 = arith.subf %85, %88 : vector<8x128xf32>
    %c5 = arith.constant 5 : index
    %91 = memref.load %arg4[%c5] : memref<24xf32, #tpu.memory_space<smem>>
    %92 = vector.broadcast %91 : f32 to vector<8x128xf32>
    %93 = arith.mulf %6, %92 : vector<8x128xf32>
    %c5_22 = arith.constant 5 : index
    %94 = memref.load %arg6[%c5_22] : memref<24xf32, #tpu.memory_space<smem>>
    %95 = vector.broadcast %94 : f32 to vector<8x128xf32>
    %96 = arith.addf %93, %95 : vector<8x128xf32>
    %c5_23 = arith.constant 5 : index
    %97 = memref.load %arg5[%c5_23] : memref<24xf32, #tpu.memory_space<smem>>
    %98 = vector.broadcast %97 : f32 to vector<8x128xf32>
    %99 = arith.mulf %1, %98 : vector<8x128xf32>
    %100 = arith.addf %96, %99 : vector<8x128xf32>
    %101 = arith.subf %96, %99 : vector<8x128xf32>
    %c6 = arith.constant 6 : index
    %102 = memref.load %arg4[%c6] : memref<24xf32, #tpu.memory_space<smem>>
    %103 = vector.broadcast %102 : f32 to vector<8x128xf32>
    %104 = arith.mulf %6, %103 : vector<8x128xf32>
    %c6_24 = arith.constant 6 : index
    %105 = memref.load %arg6[%c6_24] : memref<24xf32, #tpu.memory_space<smem>>
    %106 = vector.broadcast %105 : f32 to vector<8x128xf32>
    %107 = arith.addf %104, %106 : vector<8x128xf32>
    %c6_25 = arith.constant 6 : index
    %108 = memref.load %arg5[%c6_25] : memref<24xf32, #tpu.memory_space<smem>>
    %109 = vector.broadcast %108 : f32 to vector<8x128xf32>
    %110 = arith.mulf %1, %109 : vector<8x128xf32>
    %111 = arith.addf %107, %110 : vector<8x128xf32>
    %112 = arith.subf %107, %110 : vector<8x128xf32>
    %c7 = arith.constant 7 : index
    %113 = memref.load %arg4[%c7] : memref<24xf32, #tpu.memory_space<smem>>
    %114 = vector.broadcast %113 : f32 to vector<8x128xf32>
    %115 = arith.mulf %6, %114 : vector<8x128xf32>
    %c7_26 = arith.constant 7 : index
    %116 = memref.load %arg6[%c7_26] : memref<24xf32, #tpu.memory_space<smem>>
    %117 = vector.broadcast %116 : f32 to vector<8x128xf32>
    %118 = arith.addf %115, %117 : vector<8x128xf32>
    %c7_27 = arith.constant 7 : index
    %119 = memref.load %arg5[%c7_27] : memref<24xf32, #tpu.memory_space<smem>>
    %120 = vector.broadcast %119 : f32 to vector<8x128xf32>
    %121 = arith.mulf %1, %120 : vector<8x128xf32>
    %122 = arith.addf %118, %121 : vector<8x128xf32>
    %123 = arith.subf %118, %121 : vector<8x128xf32>
    %124 = arith.maximumf %45, %56 : vector<8x128xf32>
    %125 = arith.maximumf %124, %67 : vector<8x128xf32>
    %126 = arith.maximumf %125, %78 : vector<8x128xf32>
    %127 = arith.maximumf %126, %89 : vector<8x128xf32>
    %128 = arith.maximumf %127, %100 : vector<8x128xf32>
    %129 = arith.maximumf %128, %111 : vector<8x128xf32>
    %130 = arith.maximumf %129, %122 : vector<8x128xf32>
    %131 = arith.subf %45, %130 : vector<8x128xf32>
    %132 = math.exp %131 : vector<8x128xf32>
    %133 = arith.subf %46, %130 : vector<8x128xf32>
    %134 = math.exp %133 : vector<8x128xf32>
    %135 = arith.subf %132, %134 : vector<8x128xf32>
    %136 = arith.subf %56, %130 : vector<8x128xf32>
    %137 = math.exp %136 : vector<8x128xf32>
    %138 = arith.subf %57, %130 : vector<8x128xf32>
    %139 = math.exp %138 : vector<8x128xf32>
    %140 = arith.subf %137, %139 : vector<8x128xf32>
    %141 = arith.addf %135, %140 : vector<8x128xf32>
    %142 = arith.subf %67, %130 : vector<8x128xf32>
    %143 = math.exp %142 : vector<8x128xf32>
    %144 = arith.subf %68, %130 : vector<8x128xf32>
    %145 = math.exp %144 : vector<8x128xf32>
    %146 = arith.subf %143, %145 : vector<8x128xf32>
    %147 = arith.addf %141, %146 : vector<8x128xf32>
    %148 = arith.subf %78, %130 : vector<8x128xf32>
    %149 = math.exp %148 : vector<8x128xf32>
    %150 = arith.subf %79, %130 : vector<8x128xf32>
    %151 = math.exp %150 : vector<8x128xf32>
    %152 = arith.subf %149, %151 : vector<8x128xf32>
    %153 = arith.addf %147, %152 : vector<8x128xf32>
    %154 = arith.subf %89, %130 : vector<8x128xf32>
    %155 = math.exp %154 : vector<8x128xf32>
    %156 = arith.subf %90, %130 : vector<8x128xf32>
    %157 = math.exp %156 : vector<8x128xf32>
    %158 = arith.subf %155, %157 : vector<8x128xf32>
    %159 = arith.addf %153, %158 : vector<8x128xf32>
    %160 = arith.subf %100, %130 : vector<8x128xf32>
    %161 = math.exp %160 : vector<8x128xf32>
    %162 = arith.subf %101, %130 : vector<8x128xf32>
    %163 = math.exp %162 : vector<8x128xf32>
    %164 = arith.subf %161, %163 : vector<8x128xf32>
    %165 = arith.addf %159, %164 : vector<8x128xf32>
    %166 = arith.subf %111, %130 : vector<8x128xf32>
    %167 = math.exp %166 : vector<8x128xf32>
    %168 = arith.subf %112, %130 : vector<8x128xf32>
    %169 = math.exp %168 : vector<8x128xf32>
    %170 = arith.subf %167, %169 : vector<8x128xf32>
    %171 = arith.addf %165, %170 : vector<8x128xf32>
    %172 = arith.subf %122, %130 : vector<8x128xf32>
    %173 = math.exp %172 : vector<8x128xf32>
    %174 = arith.subf %123, %130 : vector<8x128xf32>
    %175 = math.exp %174 : vector<8x128xf32>
    %176 = arith.subf %173, %175 : vector<8x128xf32>
    %177 = arith.addf %171, %176 : vector<8x128xf32>
    %c8 = arith.constant 8 : index
    %178 = memref.load %arg4[%c8] : memref<24xf32, #tpu.memory_space<smem>>
    %179 = vector.broadcast %178 : f32 to vector<8x128xf32>
    %180 = arith.mulf %6, %179 : vector<8x128xf32>
    %c8_28 = arith.constant 8 : index
    %181 = memref.load %arg6[%c8_28] : memref<24xf32, #tpu.memory_space<smem>>
    %182 = vector.broadcast %181 : f32 to vector<8x128xf32>
    %183 = arith.addf %180, %182 : vector<8x128xf32>
    %c8_29 = arith.constant 8 : index
    %184 = memref.load %arg5[%c8_29] : memref<24xf32, #tpu.memory_space<smem>>
    %185 = vector.broadcast %184 : f32 to vector<8x128xf32>
    %186 = arith.mulf %1, %185 : vector<8x128xf32>
    %187 = arith.addf %183, %186 : vector<8x128xf32>
    %188 = arith.subf %183, %186 : vector<8x128xf32>
    %c9 = arith.constant 9 : index
    %189 = memref.load %arg4[%c9] : memref<24xf32, #tpu.memory_space<smem>>
    %190 = vector.broadcast %189 : f32 to vector<8x128xf32>
    %191 = arith.mulf %6, %190 : vector<8x128xf32>
    %c9_30 = arith.constant 9 : index
    %192 = memref.load %arg6[%c9_30] : memref<24xf32, #tpu.memory_space<smem>>
    %193 = vector.broadcast %192 : f32 to vector<8x128xf32>
    %194 = arith.addf %191, %193 : vector<8x128xf32>
    %c9_31 = arith.constant 9 : index
    %195 = memref.load %arg5[%c9_31] : memref<24xf32, #tpu.memory_space<smem>>
    %196 = vector.broadcast %195 : f32 to vector<8x128xf32>
    %197 = arith.mulf %1, %196 : vector<8x128xf32>
    %198 = arith.addf %194, %197 : vector<8x128xf32>
    %199 = arith.subf %194, %197 : vector<8x128xf32>
    %c10 = arith.constant 10 : index
    %200 = memref.load %arg4[%c10] : memref<24xf32, #tpu.memory_space<smem>>
    %201 = vector.broadcast %200 : f32 to vector<8x128xf32>
    %202 = arith.mulf %6, %201 : vector<8x128xf32>
    %c10_32 = arith.constant 10 : index
    %203 = memref.load %arg6[%c10_32] : memref<24xf32, #tpu.memory_space<smem>>
    %204 = vector.broadcast %203 : f32 to vector<8x128xf32>
    %205 = arith.addf %202, %204 : vector<8x128xf32>
    %c10_33 = arith.constant 10 : index
    %206 = memref.load %arg5[%c10_33] : memref<24xf32, #tpu.memory_space<smem>>
    %207 = vector.broadcast %206 : f32 to vector<8x128xf32>
    %208 = arith.mulf %1, %207 : vector<8x128xf32>
    %209 = arith.addf %205, %208 : vector<8x128xf32>
    %210 = arith.subf %205, %208 : vector<8x128xf32>
    %c11 = arith.constant 11 : index
    %211 = memref.load %arg4[%c11] : memref<24xf32, #tpu.memory_space<smem>>
    %212 = vector.broadcast %211 : f32 to vector<8x128xf32>
    %213 = arith.mulf %6, %212 : vector<8x128xf32>
    %c11_34 = arith.constant 11 : index
    %214 = memref.load %arg6[%c11_34] : memref<24xf32, #tpu.memory_space<smem>>
    %215 = vector.broadcast %214 : f32 to vector<8x128xf32>
    %216 = arith.addf %213, %215 : vector<8x128xf32>
    %c11_35 = arith.constant 11 : index
    %217 = memref.load %arg5[%c11_35] : memref<24xf32, #tpu.memory_space<smem>>
    %218 = vector.broadcast %217 : f32 to vector<8x128xf32>
    %219 = arith.mulf %1, %218 : vector<8x128xf32>
    %220 = arith.addf %216, %219 : vector<8x128xf32>
    %221 = arith.subf %216, %219 : vector<8x128xf32>
    %c12 = arith.constant 12 : index
    %222 = memref.load %arg4[%c12] : memref<24xf32, #tpu.memory_space<smem>>
    %223 = vector.broadcast %222 : f32 to vector<8x128xf32>
    %224 = arith.mulf %6, %223 : vector<8x128xf32>
    %c12_36 = arith.constant 12 : index
    %225 = memref.load %arg6[%c12_36] : memref<24xf32, #tpu.memory_space<smem>>
    %226 = vector.broadcast %225 : f32 to vector<8x128xf32>
    %227 = arith.addf %224, %226 : vector<8x128xf32>
    %c12_37 = arith.constant 12 : index
    %228 = memref.load %arg5[%c12_37] : memref<24xf32, #tpu.memory_space<smem>>
    %229 = vector.broadcast %228 : f32 to vector<8x128xf32>
    %230 = arith.mulf %1, %229 : vector<8x128xf32>
    %231 = arith.addf %227, %230 : vector<8x128xf32>
    %232 = arith.subf %227, %230 : vector<8x128xf32>
    %c13 = arith.constant 13 : index
    %233 = memref.load %arg4[%c13] : memref<24xf32, #tpu.memory_space<smem>>
    %234 = vector.broadcast %233 : f32 to vector<8x128xf32>
    %235 = arith.mulf %6, %234 : vector<8x128xf32>
    %c13_38 = arith.constant 13 : index
    %236 = memref.load %arg6[%c13_38] : memref<24xf32, #tpu.memory_space<smem>>
    %237 = vector.broadcast %236 : f32 to vector<8x128xf32>
    %238 = arith.addf %235, %237 : vector<8x128xf32>
    %c13_39 = arith.constant 13 : index
    %239 = memref.load %arg5[%c13_39] : memref<24xf32, #tpu.memory_space<smem>>
    %240 = vector.broadcast %239 : f32 to vector<8x128xf32>
    %241 = arith.mulf %1, %240 : vector<8x128xf32>
    %242 = arith.addf %238, %241 : vector<8x128xf32>
    %243 = arith.subf %238, %241 : vector<8x128xf32>
    %c14 = arith.constant 14 : index
    %244 = memref.load %arg4[%c14] : memref<24xf32, #tpu.memory_space<smem>>
    %245 = vector.broadcast %244 : f32 to vector<8x128xf32>
    %246 = arith.mulf %6, %245 : vector<8x128xf32>
    %c14_40 = arith.constant 14 : index
    %247 = memref.load %arg6[%c14_40] : memref<24xf32, #tpu.memory_space<smem>>
    %248 = vector.broadcast %247 : f32 to vector<8x128xf32>
    %249 = arith.addf %246, %248 : vector<8x128xf32>
    %c14_41 = arith.constant 14 : index
    %250 = memref.load %arg5[%c14_41] : memref<24xf32, #tpu.memory_space<smem>>
    %251 = vector.broadcast %250 : f32 to vector<8x128xf32>
    %252 = arith.mulf %1, %251 : vector<8x128xf32>
    %253 = arith.addf %249, %252 : vector<8x128xf32>
    %254 = arith.subf %249, %252 : vector<8x128xf32>
    %c15 = arith.constant 15 : index
    %255 = memref.load %arg4[%c15] : memref<24xf32, #tpu.memory_space<smem>>
    %256 = vector.broadcast %255 : f32 to vector<8x128xf32>
    %257 = arith.mulf %6, %256 : vector<8x128xf32>
    %c15_42 = arith.constant 15 : index
    %258 = memref.load %arg6[%c15_42] : memref<24xf32, #tpu.memory_space<smem>>
    %259 = vector.broadcast %258 : f32 to vector<8x128xf32>
    %260 = arith.addf %257, %259 : vector<8x128xf32>
    %c15_43 = arith.constant 15 : index
    %261 = memref.load %arg5[%c15_43] : memref<24xf32, #tpu.memory_space<smem>>
    %262 = vector.broadcast %261 : f32 to vector<8x128xf32>
    %263 = arith.mulf %1, %262 : vector<8x128xf32>
    %264 = arith.addf %260, %263 : vector<8x128xf32>
    %265 = arith.subf %260, %263 : vector<8x128xf32>
    %266 = arith.maximumf %187, %198 : vector<8x128xf32>
    %267 = arith.maximumf %266, %209 : vector<8x128xf32>
    %268 = arith.maximumf %267, %220 : vector<8x128xf32>
    %269 = arith.maximumf %268, %231 : vector<8x128xf32>
    %270 = arith.maximumf %269, %242 : vector<8x128xf32>
    %271 = arith.maximumf %270, %253 : vector<8x128xf32>
    %272 = arith.maximumf %271, %264 : vector<8x128xf32>
    %273 = arith.subf %187, %272 : vector<8x128xf32>
    %274 = math.exp %273 : vector<8x128xf32>
    %275 = arith.subf %188, %272 : vector<8x128xf32>
    %276 = math.exp %275 : vector<8x128xf32>
    %277 = arith.subf %274, %276 : vector<8x128xf32>
    %278 = arith.subf %198, %272 : vector<8x128xf32>
    %279 = math.exp %278 : vector<8x128xf32>
    %280 = arith.subf %199, %272 : vector<8x128xf32>
    %281 = math.exp %280 : vector<8x128xf32>
    %282 = arith.subf %279, %281 : vector<8x128xf32>
    %283 = arith.addf %277, %282 : vector<8x128xf32>
    %284 = arith.subf %209, %272 : vector<8x128xf32>
    %285 = math.exp %284 : vector<8x128xf32>
    %286 = arith.subf %210, %272 : vector<8x128xf32>
    %287 = math.exp %286 : vector<8x128xf32>
    %288 = arith.subf %285, %287 : vector<8x128xf32>
    %289 = arith.addf %283, %288 : vector<8x128xf32>
    %290 = arith.subf %220, %272 : vector<8x128xf32>
    %291 = math.exp %290 : vector<8x128xf32>
    %292 = arith.subf %221, %272 : vector<8x128xf32>
    %293 = math.exp %292 : vector<8x128xf32>
    %294 = arith.subf %291, %293 : vector<8x128xf32>
    %295 = arith.addf %289, %294 : vector<8x128xf32>
    %296 = arith.subf %231, %272 : vector<8x128xf32>
    %297 = math.exp %296 : vector<8x128xf32>
    %298 = arith.subf %232, %272 : vector<8x128xf32>
    %299 = math.exp %298 : vector<8x128xf32>
    %300 = arith.subf %297, %299 : vector<8x128xf32>
    %301 = arith.addf %295, %300 : vector<8x128xf32>
    %302 = arith.subf %242, %272 : vector<8x128xf32>
    %303 = math.exp %302 : vector<8x128xf32>
    %304 = arith.subf %243, %272 : vector<8x128xf32>
    %305 = math.exp %304 : vector<8x128xf32>
    %306 = arith.subf %303, %305 : vector<8x128xf32>
    %307 = arith.addf %301, %306 : vector<8x128xf32>
    %308 = arith.subf %253, %272 : vector<8x128xf32>
    %309 = math.exp %308 : vector<8x128xf32>
    %310 = arith.subf %254, %272 : vector<8x128xf32>
    %311 = math.exp %310 : vector<8x128xf32>
    %312 = arith.subf %309, %311 : vector<8x128xf32>
    %313 = arith.addf %307, %312 : vector<8x128xf32>
    %314 = arith.subf %264, %272 : vector<8x128xf32>
    %315 = math.exp %314 : vector<8x128xf32>
    %316 = arith.subf %265, %272 : vector<8x128xf32>
    %317 = math.exp %316 : vector<8x128xf32>
    %318 = arith.subf %315, %317 : vector<8x128xf32>
    %319 = arith.addf %313, %318 : vector<8x128xf32>
    %c16 = arith.constant 16 : index
    %320 = memref.load %arg4[%c16] : memref<24xf32, #tpu.memory_space<smem>>
    %321 = vector.broadcast %320 : f32 to vector<8x128xf32>
    %322 = arith.mulf %6, %321 : vector<8x128xf32>
    %c16_44 = arith.constant 16 : index
    %323 = memref.load %arg6[%c16_44] : memref<24xf32, #tpu.memory_space<smem>>
    %324 = vector.broadcast %323 : f32 to vector<8x128xf32>
    %325 = arith.addf %322, %324 : vector<8x128xf32>
    %c16_45 = arith.constant 16 : index
    %326 = memref.load %arg5[%c16_45] : memref<24xf32, #tpu.memory_space<smem>>
    %327 = vector.broadcast %326 : f32 to vector<8x128xf32>
    %328 = arith.mulf %1, %327 : vector<8x128xf32>
    %329 = arith.addf %325, %328 : vector<8x128xf32>
    %330 = arith.subf %325, %328 : vector<8x128xf32>
    %c17 = arith.constant 17 : index
    %331 = memref.load %arg4[%c17] : memref<24xf32, #tpu.memory_space<smem>>
    %332 = vector.broadcast %331 : f32 to vector<8x128xf32>
    %333 = arith.mulf %6, %332 : vector<8x128xf32>
    %c17_46 = arith.constant 17 : index
    %334 = memref.load %arg6[%c17_46] : memref<24xf32, #tpu.memory_space<smem>>
    %335 = vector.broadcast %334 : f32 to vector<8x128xf32>
    %336 = arith.addf %333, %335 : vector<8x128xf32>
    %c17_47 = arith.constant 17 : index
    %337 = memref.load %arg5[%c17_47] : memref<24xf32, #tpu.memory_space<smem>>
    %338 = vector.broadcast %337 : f32 to vector<8x128xf32>
    %339 = arith.mulf %1, %338 : vector<8x128xf32>
    %340 = arith.addf %336, %339 : vector<8x128xf32>
    %341 = arith.subf %336, %339 : vector<8x128xf32>
    %c18 = arith.constant 18 : index
    %342 = memref.load %arg4[%c18] : memref<24xf32, #tpu.memory_space<smem>>
    %343 = vector.broadcast %342 : f32 to vector<8x128xf32>
    %344 = arith.mulf %6, %343 : vector<8x128xf32>
    %c18_48 = arith.constant 18 : index
    %345 = memref.load %arg6[%c18_48] : memref<24xf32, #tpu.memory_space<smem>>
    %346 = vector.broadcast %345 : f32 to vector<8x128xf32>
    %347 = arith.addf %344, %346 : vector<8x128xf32>
    %c18_49 = arith.constant 18 : index
    %348 = memref.load %arg5[%c18_49] : memref<24xf32, #tpu.memory_space<smem>>
    %349 = vector.broadcast %348 : f32 to vector<8x128xf32>
    %350 = arith.mulf %1, %349 : vector<8x128xf32>
    %351 = arith.addf %347, %350 : vector<8x128xf32>
    %352 = arith.subf %347, %350 : vector<8x128xf32>
    %c19 = arith.constant 19 : index
    %353 = memref.load %arg4[%c19] : memref<24xf32, #tpu.memory_space<smem>>
    %354 = vector.broadcast %353 : f32 to vector<8x128xf32>
    %355 = arith.mulf %6, %354 : vector<8x128xf32>
    %c19_50 = arith.constant 19 : index
    %356 = memref.load %arg6[%c19_50] : memref<24xf32, #tpu.memory_space<smem>>
    %357 = vector.broadcast %356 : f32 to vector<8x128xf32>
    %358 = arith.addf %355, %357 : vector<8x128xf32>
    %c19_51 = arith.constant 19 : index
    %359 = memref.load %arg5[%c19_51] : memref<24xf32, #tpu.memory_space<smem>>
    %360 = vector.broadcast %359 : f32 to vector<8x128xf32>
    %361 = arith.mulf %1, %360 : vector<8x128xf32>
    %362 = arith.addf %358, %361 : vector<8x128xf32>
    %363 = arith.subf %358, %361 : vector<8x128xf32>
    %c20 = arith.constant 20 : index
    %364 = memref.load %arg4[%c20] : memref<24xf32, #tpu.memory_space<smem>>
    %365 = vector.broadcast %364 : f32 to vector<8x128xf32>
    %366 = arith.mulf %6, %365 : vector<8x128xf32>
    %c20_52 = arith.constant 20 : index
    %367 = memref.load %arg6[%c20_52] : memref<24xf32, #tpu.memory_space<smem>>
    %368 = vector.broadcast %367 : f32 to vector<8x128xf32>
    %369 = arith.addf %366, %368 : vector<8x128xf32>
    %c20_53 = arith.constant 20 : index
    %370 = memref.load %arg5[%c20_53] : memref<24xf32, #tpu.memory_space<smem>>
    %371 = vector.broadcast %370 : f32 to vector<8x128xf32>
    %372 = arith.mulf %1, %371 : vector<8x128xf32>
    %373 = arith.addf %369, %372 : vector<8x128xf32>
    %374 = arith.subf %369, %372 : vector<8x128xf32>
    %c21 = arith.constant 21 : index
    %375 = memref.load %arg4[%c21] : memref<24xf32, #tpu.memory_space<smem>>
    %376 = vector.broadcast %375 : f32 to vector<8x128xf32>
    %377 = arith.mulf %6, %376 : vector<8x128xf32>
    %c21_54 = arith.constant 21 : index
    %378 = memref.load %arg6[%c21_54] : memref<24xf32, #tpu.memory_space<smem>>
    %379 = vector.broadcast %378 : f32 to vector<8x128xf32>
    %380 = arith.addf %377, %379 : vector<8x128xf32>
    %c21_55 = arith.constant 21 : index
    %381 = memref.load %arg5[%c21_55] : memref<24xf32, #tpu.memory_space<smem>>
    %382 = vector.broadcast %381 : f32 to vector<8x128xf32>
    %383 = arith.mulf %1, %382 : vector<8x128xf32>
    %384 = arith.addf %380, %383 : vector<8x128xf32>
    %385 = arith.subf %380, %383 : vector<8x128xf32>
    %c22 = arith.constant 22 : index
    %386 = memref.load %arg4[%c22] : memref<24xf32, #tpu.memory_space<smem>>
    %387 = vector.broadcast %386 : f32 to vector<8x128xf32>
    %388 = arith.mulf %6, %387 : vector<8x128xf32>
    %c22_56 = arith.constant 22 : index
    %389 = memref.load %arg6[%c22_56] : memref<24xf32, #tpu.memory_space<smem>>
    %390 = vector.broadcast %389 : f32 to vector<8x128xf32>
    %391 = arith.addf %388, %390 : vector<8x128xf32>
    %c22_57 = arith.constant 22 : index
    %392 = memref.load %arg5[%c22_57] : memref<24xf32, #tpu.memory_space<smem>>
    %393 = vector.broadcast %392 : f32 to vector<8x128xf32>
    %394 = arith.mulf %1, %393 : vector<8x128xf32>
    %395 = arith.addf %391, %394 : vector<8x128xf32>
    %396 = arith.subf %391, %394 : vector<8x128xf32>
    %c23 = arith.constant 23 : index
    %397 = memref.load %arg4[%c23] : memref<24xf32, #tpu.memory_space<smem>>
    %398 = vector.broadcast %397 : f32 to vector<8x128xf32>
    %399 = arith.mulf %6, %398 : vector<8x128xf32>
    %c23_58 = arith.constant 23 : index
    %400 = memref.load %arg6[%c23_58] : memref<24xf32, #tpu.memory_space<smem>>
    %401 = vector.broadcast %400 : f32 to vector<8x128xf32>
    %402 = arith.addf %399, %401 : vector<8x128xf32>
    %c23_59 = arith.constant 23 : index
    %403 = memref.load %arg5[%c23_59] : memref<24xf32, #tpu.memory_space<smem>>
    %404 = vector.broadcast %403 : f32 to vector<8x128xf32>
    %405 = arith.mulf %1, %404 : vector<8x128xf32>
    %406 = arith.addf %402, %405 : vector<8x128xf32>
    %407 = arith.subf %402, %405 : vector<8x128xf32>
    %408 = arith.maximumf %329, %340 : vector<8x128xf32>
    %409 = arith.maximumf %408, %351 : vector<8x128xf32>
    %410 = arith.maximumf %409, %362 : vector<8x128xf32>
    %411 = arith.maximumf %410, %373 : vector<8x128xf32>
    %412 = arith.maximumf %411, %384 : vector<8x128xf32>
    %413 = arith.maximumf %412, %395 : vector<8x128xf32>
    %414 = arith.maximumf %413, %406 : vector<8x128xf32>
    %415 = arith.subf %329, %414 : vector<8x128xf32>
    %416 = math.exp %415 : vector<8x128xf32>
    %417 = arith.subf %330, %414 : vector<8x128xf32>
    %418 = math.exp %417 : vector<8x128xf32>
    %419 = arith.subf %416, %418 : vector<8x128xf32>
    %420 = arith.subf %340, %414 : vector<8x128xf32>
    %421 = math.exp %420 : vector<8x128xf32>
    %422 = arith.subf %341, %414 : vector<8x128xf32>
    %423 = math.exp %422 : vector<8x128xf32>
    %424 = arith.subf %421, %423 : vector<8x128xf32>
    %425 = arith.addf %419, %424 : vector<8x128xf32>
    %426 = arith.subf %351, %414 : vector<8x128xf32>
    %427 = math.exp %426 : vector<8x128xf32>
    %428 = arith.subf %352, %414 : vector<8x128xf32>
    %429 = math.exp %428 : vector<8x128xf32>
    %430 = arith.subf %427, %429 : vector<8x128xf32>
    %431 = arith.addf %425, %430 : vector<8x128xf32>
    %432 = arith.subf %362, %414 : vector<8x128xf32>
    %433 = math.exp %432 : vector<8x128xf32>
    %434 = arith.subf %363, %414 : vector<8x128xf32>
    %435 = math.exp %434 : vector<8x128xf32>
    %436 = arith.subf %433, %435 : vector<8x128xf32>
    %437 = arith.addf %431, %436 : vector<8x128xf32>
    %438 = arith.subf %373, %414 : vector<8x128xf32>
    %439 = math.exp %438 : vector<8x128xf32>
    %440 = arith.subf %374, %414 : vector<8x128xf32>
    %441 = math.exp %440 : vector<8x128xf32>
    %442 = arith.subf %439, %441 : vector<8x128xf32>
    %443 = arith.addf %437, %442 : vector<8x128xf32>
    %444 = arith.subf %384, %414 : vector<8x128xf32>
    %445 = math.exp %444 : vector<8x128xf32>
    %446 = arith.subf %385, %414 : vector<8x128xf32>
    %447 = math.exp %446 : vector<8x128xf32>
    %448 = arith.subf %445, %447 : vector<8x128xf32>
    %449 = arith.addf %443, %448 : vector<8x128xf32>
    %450 = arith.subf %395, %414 : vector<8x128xf32>
    %451 = math.exp %450 : vector<8x128xf32>
    %452 = arith.subf %396, %414 : vector<8x128xf32>
    %453 = math.exp %452 : vector<8x128xf32>
    %454 = arith.subf %451, %453 : vector<8x128xf32>
    %455 = arith.addf %449, %454 : vector<8x128xf32>
    %456 = arith.subf %406, %414 : vector<8x128xf32>
    %457 = math.exp %456 : vector<8x128xf32>
    %458 = arith.subf %407, %414 : vector<8x128xf32>
    %459 = math.exp %458 : vector<8x128xf32>
    %460 = arith.subf %457, %459 : vector<8x128xf32>
    %461 = arith.addf %455, %460 : vector<8x128xf32>
    %462 = arith.maximumf %21, %28 : vector<8x128xf32>
    %463 = arith.maximumf %462, %35 : vector<8x128xf32>
    %464 = arith.maximumf %463, %130 : vector<8x128xf32>
    %465 = arith.maximumf %464, %272 : vector<8x128xf32>
    %466 = arith.maximumf %465, %414 : vector<8x128xf32>
    %467 = arith.subf %21, %466 : vector<8x128xf32>
    %468 = math.exp %467 : vector<8x128xf32>
    %469 = arith.subf %28, %466 : vector<8x128xf32>
    %470 = math.exp %469 : vector<8x128xf32>
    %471 = arith.addf %468, %470 : vector<8x128xf32>
    %472 = arith.subf %35, %466 : vector<8x128xf32>
    %473 = math.exp %472 : vector<8x128xf32>
    %474 = arith.addf %471, %473 : vector<8x128xf32>
    %475 = arith.subf %130, %466 : vector<8x128xf32>
    %476 = math.exp %475 : vector<8x128xf32>
    %477 = arith.mulf %177, %476 : vector<8x128xf32>
    %478 = arith.addf %474, %477 : vector<8x128xf32>
    %479 = arith.subf %272, %466 : vector<8x128xf32>
    %480 = math.exp %479 : vector<8x128xf32>
    %481 = arith.mulf %319, %480 : vector<8x128xf32>
    %482 = arith.addf %478, %481 : vector<8x128xf32>
    %483 = arith.subf %414, %466 : vector<8x128xf32>
    %484 = math.exp %483 : vector<8x128xf32>
    %485 = arith.mulf %461, %484 : vector<8x128xf32>
    %486 = arith.addf %482, %485 : vector<8x128xf32>
    %487 = arith.addf %14, %466 : vector<8x128xf32>
    %488 = math.log %486 : vector<8x128xf32>
    %489 = arith.addf %487, %488 : vector<8x128xf32>
    %c0_60 = arith.constant 0 : index
    %c0_61 = arith.constant 0 : index
    %490 = vector.load %arg9[%c0_60, %c0_61] : memref<8x128xf32, #tpu.memory_space<vmem>>, vector<8x128xf32>
    tpu.vector_store %arg9[%c0_60, %c0_61], %489 {strides = array<i32>} : memref<8x128xf32, #tpu.memory_space<vmem>>, vector<8x128xf32>,
    return
  }
  func.func @transform_0(%arg0: i32) -> i32 {
    %c0_i32 = arith.constant 0 : i32
    %c0_i32_0 = arith.constant 0 : i32
    return %c0_i32 : i32
  }
  func.func @transform_1(%arg0: i32) -> i32 {
    %c0_i32 = arith.constant 0 : i32
    %c0_i32_0 = arith.constant 0 : i32
    return %c0_i32 : i32
  }
  func.func @transform_2(%arg0: i32) -> i32 {
    %c0_i32 = arith.constant 0 : i32
    %c0_i32_0 = arith.constant 0 : i32
    return %c0_i32 : i32
  }
  func.func @transform_3(%arg0: i32) -> i32 {
    %c0_i32 = arith.constant 0 : i32
    %c0_i32_0 = arith.constant 0 : i32
    return %c0_i32 : i32
  }
  func.func @transform_4(%arg0: i32) -> i32 {
    %c0_i32 = arith.constant 0 : i32
    %c0_i32_0 = arith.constant 0 : i32
    return %c0_i32 : i32
  }
  func.func @transform_5(%arg0: i32) -> i32 {
    %c0_i32 = arith.constant 0 : i32
    %c0_i32_0 = arith.constant 0 : i32
    return %c0_i32 : i32
  }
  func.func @transform_6(%arg0: i32) -> (i32, i32) {
    %c0_i32 = arith.constant 0 : i32
    %c0_i32_0 = arith.constant 0 : i32
    return %arg0, %c0_i32 : i32, i32
  }
  func.func @transform_7(%arg0: i32) -> (i32, i32) {
    %c0_i32 = arith.constant 0 : i32
    %c0_i32_0 = arith.constant 0 : i32
    return %arg0, %c0_i32 : i32, i32
  }
  func.func @transform_8(%arg0: i32) -> (i32, i32) {
    %c0_i32 = arith.constant 0 : i32
    %c0_i32_0 = arith.constant 0 : i32
    return %arg0, %c0_i32 : i32, i32
  }
}

</mosaic_0001>

<llo_original>
// kernel: tpu_custom_call.1
$region0: #{tpu_custom_call.1}
  #allocation0 [shape = 'u32[]', space=smem, size = 0x4, offset = 0x4, fixed_abs, tag = 'smem constant byte address 0x4 - core index']
  #allocation1 [shape = 'u32[144,128]{1,0:T(1,128)}', space=vmem, size = 0x12000, scoped, tag = 'internal scratch']
  %s0 = inlined_call_operand.hbm [shape: f32[2], index: 0, kind: input, shape index: {}]
  %s1 = inlined_call_operand.vmem [shape: f32[3], index: 1, kind: input, shape index: {}]
  %s2 = inlined_call_operand.vmem [shape: f32[3], index: 2, kind: input, shape index: {}]
  %s3 = inlined_call_operand.vmem [shape: f32[24], index: 3, kind: input, shape index: {}]
  %s4 = inlined_call_operand.vmem [shape: f32[24], index: 4, kind: input, shape index: {}]
  %s5 = inlined_call_operand.vmem [shape: f32[24], index: 5, kind: input, shape index: {}]
  %s6 = inlined_call_operand.vmem [shape: f32[16,128], index: 6, kind: input, shape index: {}]
  %s7 = inlined_call_operand.hbm [shape: f32[16,128], index: 7, kind: input, shape index: {}]
  %s8 = inlined_call_operand.hbm [shape: f32[16,128], index: 8, kind: output, shape index: {}]
  %s9 = sld [smem:[#allocation0]]
  $region93: #{tpu_custom_call.1} parent=0
    _
  %s11 = ssub.s32 1, %s9
  %s12 = scalar_select 0, %s11, %s9
  $region1: #{tpu_custom_call.1} parent=0
    #allocation2 [shape = 'u8[512]{0}', space=smem, size = 0x200, scoped, tag = 'input window, operand 0, single buffered']
    #allocation3 [shape = 's32[2]{0}', space=sflag, size = 0x8, scoped, tag = 'scoped memory for tpu_custom_call.1']
    #allocation4 [shape = 's32[2]{0}', space=sflag, size = 0x8, scoped, tag = 'scoped memory for tpu_custom_call.1']
    #allocation5 [shape = 's32[2]{0}', space=sflag, size = 0x8, scoped, tag = 'scoped memory for tpu_custom_call.1']
    #allocation6 [shape = 's32[2]{0}', space=sflag, size = 0x8, scoped, tag = 'scoped memory for tpu_custom_call.1']
    #allocation7 [shape = 'u8[512]{0}', space=smem, size = 0x200, scoped, tag = 'input window, operand 1, single buffered']
    #allocation8 [shape = 'u8[512]{0}', space=smem, size = 0x200, scoped, tag = 'input window, operand 2, single buffered']
    #allocation9 [shape = 's32[1]{0}', space=sflag, size = 0x4, scoped, tag = 'scoped memory for tpu_custom_call.1']
    #allocation10 [shape = 'u8[512]{0}', space=smem, size = 0x200, scoped, tag = 'input window, operand 3, single buffered']
    #allocation11 [shape = 'u8[512]{0}', space=smem, size = 0x200, scoped, tag = 'input window, operand 4, single buffered']
    #allocation12 [shape = 's32[1]{0}', space=sflag, size = 0x4, scoped, tag = 'scoped memory for tpu_custom_call.1']
    #allocation13 [shape = 'u8[512]{0}', space=smem, size = 0x200, scoped, tag = 'input window, operand 5, single buffered']
    #allocation14 [shape = 'u8[8192]{0}', space=vmem, size = 0x2000, scoped, tag = 'input window, operand 7']
    #allocation15 [shape = 'u8[8192]{0}', space=vmem, size = 0x2000, scoped, tag = 'output window, operand 0']
    %13 = vsyncpa [#allocation5], 0
    %14 = vsyncpa [#allocation6], 0
    %15 = vsyncpa [#allocation9], 0
    %16 = vsyncpa [#allocation12], 0
    %17 = vsyncpa [#allocation3], 0
    %s18 = scalar_lea.sflag [#allocation3], 1
    %19 = vsyncpa %s18, 0
    %20 = vsyncpa [#allocation4], 0
    %s21 = scalar_lea.sflag [#allocation4], 1
    %22 = vsyncpa %s21, 0
    loop: start=0, step=1, limit=4
    $region2: #{tpu_custom_call.1} parent=1 // loop_pre_header
      _
    $region3: #{tpu_custom_call.1} parent=1 // loop_header
      %s24 = sphi 0, %s28
      %p25 = scmp.ge.s32.totalorder %s24, 4
      %s32 = sphi 0, %s32
      %s34 = sphi 0, %s32
      %s35 = sphi 0, %s34
      %s49 = sphi 0, %s35
      %s53 = sphi 0, %s53
      %s55 = sphi 0, %s53
      %s56 = sphi 0, %s55
      %s70 = sphi 0, %s56
      %s74 = sphi 0, %s74
      %s76 = sphi 0, %s74
      %s77 = sphi 0, %s76
      %s91 = sphi 0, %s77
      %s95 = sphi 0, %s95
      %s97 = sphi 0, %s95
      %s98 = sphi 0, %s97
      %s112 = sphi 0, %s98
      %s116 = sphi 0, %s116
      %s118 = sphi 0, %s116
      %s119 = sphi 0, %s118
      %s133 = sphi 0, %s119
      %s137 = sphi 0, %s137
      %s139 = sphi 0, %s137
      %s140 = sphi 0, %s139
      %s154 = sphi 0, %s140
      %s160 = sphi 0, %s162
      %s163 = sphi 0, %s160
      %s164 = sphi 0, %s163
      %s180 = sphi 0, %s164
      %s186 = sphi 0, %s188
      %s189 = sphi 0, %s186
      %s190 = sphi 0, %s189
      %s206 = sphi 0, %s190
      %s212 = sphi 0, %s214
      %s215 = sphi 0, %s212
      %s216 = sphi 0, %s215
      %s232 = sphi 0, %s216
    $region4: #{tpu_custom_call.1} parent=1 // loop_header_branch
      %27 = sbr.rel (%p25) target = $region8
    $region5: #{tpu_custom_call.1} parent=1 // loop_body
      %s29 = ssub.s32 %s24, 1
      %s30 = ssub.s32 %s24, 2
      %s31 = sadd.s32 %s24, 1
      %s33 = sadd.s32 %s32, 1
      %p36 = scmp.eq.s32.totalorder %s24, 1
      %p37 = scmp.ne.s32.totalorder %s32, %s34
      %p38 = scmp.eq.s32.totalorder %s24, 0
      %p39 = por %p37, %p38
      %p40 = scmp.ne.s32.totalorder %s32, %s34
      %p41 = scmp.eq.s32.totalorder %s29, 1
      %p42 = por %p40, %p41
      %p43 = scmp.ne.s32.totalorder %s34, %s35
      %p44 = scmp.eq.s32.totalorder %s29, 0
      %p45 = por %p43, %p44
      %p46 = scmp.ne.s32.totalorder %s34, %s35
      %p47 = scmp.eq.s32.totalorder %s30, 1
      %p48 = por %p46, %p47
      %p50 = scmp.ne.s32.totalorder %s35, %s49
      %p51 = scmp.eq.s32.totalorder %s30, 0
      %p52 = por %p50, %p51
      %s54 = sadd.s32 %s53, 1
      %p57 = scmp.eq.s32.totalorder %s24, 1
      %p58 = scmp.ne.s32.totalorder %s53, %s55
      %p59 = scmp.eq.s32.totalorder %s24, 0
      %p60 = por %p58, %p59
      %p61 = scmp.ne.s32.totalorder %s53, %s55
      %p62 = scmp.eq.s32.totalorder %s29, 1
      %p63 = por %p61, %p62
      %p64 = scmp.ne.s32.totalorder %s55, %s56
      %p65 = scmp.eq.s32.totalorder %s29, 0
      %p66 = por %p64, %p65
      %p67 = scmp.ne.s32.totalorder %s55, %s56
      %p68 = scmp.eq.s32.totalorder %s30, 1
      %p69 = por %p67, %p68
      %p71 = scmp.ne.s32.totalorder %s56, %s70
      %p72 = scmp.eq.s32.totalorder %s30, 0
      %p73 = por %p71, %p72
      %s75 = sadd.s32 %s74, 1
      %p78 = scmp.eq.s32.totalorder %s24, 1
      %p79 = scmp.ne.s32.totalorder %s74, %s76
      %p80 = scmp.eq.s32.totalorder %s24, 0
      %p81 = por %p79, %p80
      %p82 = scmp.ne.s32.totalorder %s74, %s76
      %p83 = scmp.eq.s32.totalorder %s29, 1
      %p84 = por %p82, %p83
      %p85 = scmp.ne.s32.totalorder %s76, %s77
      %p86 = scmp.eq.s32.totalorder %s29, 0
      %p87 = por %p85, %p86
      %p88 = scmp.ne.s32.totalorder %s76, %s77
      %p89 = scmp.eq.s32.totalorder %s30, 1
      %p90 = por %p88, %p89
      %p92 = scmp.ne.s32.totalorder %s77, %s91
      %p93 = scmp.eq.s32.totalorder %s30, 0
      %p94 = por %p92, %p93
      %s96 = sadd.s32 %s95, 1
      %p99 = scmp.eq.s32.totalorder %s24, 1
      %p100 = scmp.ne.s32.totalorder %s95, %s97
      %p101 = scmp.eq.s32.totalorder %s24, 0
      %p102 = por %p100, %p101
      %p103 = scmp.ne.s32.totalorder %s95, %s97
      %p104 = scmp.eq.s32.totalorder %s29, 1
      %p105 = por %p103, %p104
      %p106 = scmp.ne.s32.totalorder %s97, %s98
      %p107 = scmp.eq.s32.totalorder %s29, 0
      %p108 = por %p106, %p107
      %p109 = scmp.ne.s32.totalorder %s97, %s98
      %p110 = scmp.eq.s32.totalorder %s30, 1
      %p111 = por %p109, %p110
      %p113 = scmp.ne.s32.totalorder %s98, %s112
      %p114 = scmp.eq.s32.totalorder %s30, 0
      %p115 = por %p113, %p114
      %s117 = sadd.s32 %s116, 1
      %p120 = scmp.eq.s32.totalorder %s24, 1
      %p121 = scmp.ne.s32.totalorder %s116, %s118
      %p122 = scmp.eq.s32.totalorder %s24, 0
      %p123 = por %p121, %p122
      %p124 = scmp.ne.s32.totalorder %s116, %s118
      %p125 = scmp.eq.s32.totalorder %s29, 1
      %p126 = por %p124, %p125
      %p127 = scmp.ne.s32.totalorder %s118, %s119
      %p128 = scmp.eq.s32.totalorder %s29, 0
      %p129 = por %p127, %p128
      %p130 = scmp.ne.s32.totalorder %s118, %s119
      %p131 = scmp.eq.s32.totalorder %s30, 1
      %p132 = por %p130, %p131
      %p134 = scmp.ne.s32.totalorder %s119, %s133
      %p135 = scmp.eq.s32.totalorder %s30, 0
      %p136 = por %p134, %p135
      %s138 = sadd.s32 %s137, 1
      %p141 = scmp.eq.s32.totalorder %s24, 1
      %p142 = scmp.ne.s32.totalorder %s137, %s139
      %p143 = scmp.eq.s32.totalorder %s24, 0
      %p144 = por %p142, %p143
      %p145 = scmp.ne.s32.totalorder %s137, %s139
      %p146 = scmp.eq.s32.totalorder %s29, 1
      %p147 = por %p145, %p146
      %p148 = scmp.ne.s32.totalorder %s139, %s140
      %p149 = scmp.eq.s32.totalorder %s29, 0
      %p150 = por %p148, %p149
      %p151 = scmp.ne.s32.totalorder %s139, %s140
      %p152 = scmp.eq.s32.totalorder %s30, 1
      %p153 = por %p151, %p152
      %p155 = scmp.ne.s32.totalorder %s140, %s154
      %p156 = scmp.eq.s32.totalorder %s30, 0
      %p157 = por %p155, %p156
      %s158 = ssub.s32 %s24, %s31
      %p159 = scmp.eq.s32.totalorder %s158, 0
      %s161 = sadd.s32 %s160, 1
      %s162 = scalar_select %p159, %s160, %s161
      %p165 = pneg %p159
      %p166 = scmp.eq.s32.totalorder %s24, 1
      %p167 = por %p165, %p166
      %p168 = scmp.ne.s32.totalorder %s160, %s163
      %p169 = scmp.eq.s32.totalorder %s24, 0
      %p170 = por %p168, %p169
      %p171 = scmp.ne.s32.totalorder %s160, %s163
      %p172 = scmp.eq.s32.totalorder %s29, 1
      %p173 = por %p171, %p172
      %p174 = scmp.ne.s32.totalorder %s163, %s164
      %p175 = scmp.eq.s32.totalorder %s29, 0
      %p176 = por %p174, %p175
      %p177 = scmp.ne.s32.totalorder %s163, %s164
      %p178 = scmp.eq.s32.totalorder %s30, 1
      %p179 = por %p177, %p178
      %p181 = scmp.ne.s32.totalorder %s164, %s180
      %p182 = scmp.eq.s32.totalorder %s30, 0
      %p183 = por %p181, %p182
      %s184 = ssub.s32 %s24, %s31
      %p185 = scmp.eq.s32.totalorder %s184, 0
      %s187 = sadd.s32 %s186, 1
      %s188 = scalar_select %p185, %s186, %s187
      %p191 = pneg %p185
      %p192 = scmp.eq.s32.totalorder %s24, 1
      %p193 = por %p191, %p192
      %p194 = scmp.ne.s32.totalorder %s186, %s189
      %p195 = scmp.eq.s32.totalorder %s24, 0
      %p196 = por %p194, %p195
      %p197 = scmp.ne.s32.totalorder %s186, %s189
      %p198 = scmp.eq.s32.totalorder %s29, 1
      %p199 = por %p197, %p198
      %p200 = scmp.ne.s32.totalorder %s189, %s190
      %p201 = scmp.eq.s32.totalorder %s29, 0
      %p202 = por %p200, %p201
      %p203 = scmp.ne.s32.totalorder %s189, %s190
      %p204 = scmp.eq.s32.totalorder %s30, 1
      %p205 = por %p203, %p204
      %p207 = scmp.ne.s32.totalorder %s190, %s206
      %p208 = scmp.eq.s32.totalorder %s30, 0
      %p209 = por %p207, %p208
      %s210 = ssub.s32 %s24, %s31
      %p211 = scmp.eq.s32.totalorder %s210, 0
      %s213 = sadd.s32 %s212, 1
      %s214 = scalar_select %p211, %s212, %s213
      %p217 = pneg %p211
      %p218 = scmp.eq.s32.totalorder %s24, 1
      %p219 = por %p217, %p218
      %p220 = scmp.ne.s32.totalorder %s212, %s215
      %p221 = scmp.eq.s32.totalorder %s24, 0
      %p222 = por %p220, %p221
      %p223 = scmp.ne.s32.totalorder %s212, %s215
      %p224 = scmp.eq.s32.totalorder %s29, 1
      %p225 = por %p223, %p224
      %p226 = scmp.ne.s32.totalorder %s215, %s216
      %p227 = scmp.eq.s32.totalorder %s29, 0
      %p228 = por %p226, %p227
      %p229 = scmp.ne.s32.totalorder %s215, %s216
      %p230 = scmp.eq.s32.totalorder %s30, 1
      %p231 = por %p229, %p230
      %p233 = scmp.ne.s32.totalorder %s216, %s232
      %p234 = scmp.eq.s32.totalorder %s30, 0
      %p235 = por %p233, %p234
      %p236 = scmp.le.s32.totalorder 1, %s24
      %p237 = scmp.lt.s32.totalorder %s24, 3
      %p238 = pnand %p236, %p237
      %p239 = pneg %p238
      // Predicated region
      $region9: #{tpu_custom_call.1} parent=5 // pred_check
        _
      $region10: #{tpu_custom_call.1} parent=5 // pred_check_branch
        %241 = sbr.rel (%p238) target = $region12
      $region11: #{tpu_custom_call.1} parent=5 // pred_region
        %s242 = ssub.s32 %s24, 1
        // Predicated region
        $region13: #{tpu_custom_call.1} parent=11 // pred_check
          %p243 = pneg %p45
        $region14: #{tpu_custom_call.1} parent=11 // pred_check_branch
          %245 = sbr.rel (%p243) target = $region16
        $region15: #{tpu_custom_call.1} parent=11 // pred_region
          %s247 = ssub.s32 16, 16
          %248 = vsyncadd [#allocation5], %s247
          %251 = dma.hbm_to_smem %s0, 16, [#allocation2], [#allocation5]
        $region16: #{tpu_custom_call.1} parent=11 // pred_fallthru
          _
        // Predicated region
        $region17: #{tpu_custom_call.1} parent=11 // pred_check
          %p252 = pneg %p66
        $region18: #{tpu_custom_call.1} parent=11 // pred_check_branch
          %254 = sbr.rel (%p252) target = $region20
        $region19: #{tpu_custom_call.1} parent=11 // pred_region
          %s256 = ssub.s32 16, 16
          %257 = vsyncadd [#allocation6], %s256
          %s259 = sshll.u32 %s1, 4
          %s260 = int_to_ptr.vmem [resolvable:$true] %s259
          %262 = dma.vmem_to_smem %s260, 16, [#allocation7], [#allocation6]
        $region20: #{tpu_custom_call.1} parent=11 // pred_fallthru
          _
        // Predicated region
        $region21: #{tpu_custom_call.1} parent=11 // pred_check
          %p263 = pneg %p87
        $region22: #{tpu_custom_call.1} parent=11 // pred_check_branch
          %265 = sbr.rel (%p263) target = $region24
        $region23: #{tpu_custom_call.1} parent=11 // pred_region
          %s267 = ssub.s32 16, 16
          %268 = vsyncadd [#allocation9], %s267
          %s270 = sshll.u32 %s2, 4
          %s271 = int_to_ptr.vmem [resolvable:$true] %s270
          %273 = dma.vmem_to_smem %s271, 16, [#allocation8], [#allocation9]
        $region24: #{tpu_custom_call.1} parent=11 // pred_fallthru
          _
        // Predicated region
        $region25: #{tpu_custom_call.1} parent=11 // pred_check
          %p274 = pneg %p108
        $region26: #{tpu_custom_call.1} parent=11 // pred_check_branch
          %276 = sbr.rel (%p274) target = $region28
        $region27: #{tpu_custom_call.1} parent=11 // pred_region
          %s278 = ssub.s32 16, 16
          %279 = vsyncadd [#allocation9], %s278
          %s281 = sshll.u32 %s3, 4
          %s282 = int_to_ptr.vmem [resolvable:$true] %s281
          %284 = dma.vmem_to_smem %s282, 16, [#allocation10], [#allocation9]
        $region28: #{tpu_custom_call.1} parent=11 // pred_fallthru
          _
        // Predicated region
        $region29: #{tpu_custom_call.1} parent=11 // pred_check
          %p285 = pneg %p129
        $region30: #{tpu_custom_call.1} parent=11 // pred_check_branch
          %287 = sbr.rel (%p285) target = $region32
        $region31: #{tpu_custom_call.1} parent=11 // pred_region
          %s289 = ssub.s32 16, 16
          %290 = vsyncadd [#allocation12], %s289
          %s292 = sshll.u32 %s4, 4
          %s293 = int_to_ptr.vmem [resolvable:$true] %s292
          %295 = dma.vmem_to_smem %s293, 16, [#allocation11], [#allocation12]
        $region32: #{tpu_custom_call.1} parent=11 // pred_fallthru
          _
        // Predicated region
        $region33: #{tpu_custom_call.1} parent=11 // pred_check
          %p296 = pneg %p150
        $region34: #{tpu_custom_call.1} parent=11 // pred_check_branch
          %298 = sbr.rel (%p296) target = $region36
        $region35: #{tpu_custom_call.1} parent=11 // pred_region
          %s300 = ssub.s32 16, 16
          %301 = vsyncadd [#allocation12], %s300
          %s303 = sshll.u32 %s5, 4
          %s304 = int_to_ptr.vmem [resolvable:$true] %s303
          %306 = dma.vmem_to_smem %s304, 16, [#allocation13], [#allocation12]
        $region36: #{tpu_custom_call.1} parent=11 // pred_fallthru
          _
      $region12: #{tpu_custom_call.1} parent=5 // pred_fallthru
        _
      %p307 = scmp.lt.s32.totalorder %s24, 2
      // Predicated region
      $region37: #{tpu_custom_call.1} parent=5 // pred_check
        %p308 = pneg %p307
      $region38: #{tpu_custom_call.1} parent=5 // pred_check_branch
        %310 = sbr.rel (%p308) target = $region40
      $region39: #{tpu_custom_call.1} parent=5 // pred_region
        // Predicated region
        $region41: #{tpu_custom_call.1} parent=39 // pred_check
          %p311 = pneg %p170
        $region42: #{tpu_custom_call.1} parent=39 // pred_check_branch
          %313 = sbr.rel (%p311) target = $region44
        $region43: #{tpu_custom_call.1} parent=39 // pred_region
          %p314 = scmp.lt.s32.totalorder %s24, 1
          %s315 = scalar_select %p314, %s24, 1
          %s316 = smul.addr %s315, 8
          %s317 = scalar_lea.vmem %s6, %s316
        $region44: #{tpu_custom_call.1} parent=39 // pred_fallthru
          _
        // Predicated region
        $region45: #{tpu_custom_call.1} parent=39 // pred_check
          %p318 = pneg %p196
        $region46: #{tpu_custom_call.1} parent=39 // pred_check_branch
          %320 = sbr.rel (%p318) target = $region48
        $region47: #{tpu_custom_call.1} parent=39 // pred_region
          %s321 = sand.u32 %s186, 1
          %s322 = scalar_lea.sflag [#allocation3], %s321
          %s323 = sand.u32 %s186, 1
          %s324 = smul.addr %s323, 8
          %s325 = scalar_lea.vmem [#allocation14], %s324
          %s327 = ssub.s32 128, 128
          %328 = vsyncadd %s322, %s327
          %s329 = smul.addr %s24, 128
          %s330 = scalar_lea.hbm %s7, %s329
          %s332 = sshll.u32 %s325, 4
          %s333 = int_to_ptr.vmem [resolvable:$true] %s332
          %335 = dma.hbm_to_vmem [thread:$0]  %s330, 128, %s333, %s322
        $region48: #{tpu_custom_call.1} parent=39 // pred_fallthru
          _
      $region40: #{tpu_custom_call.1} parent=5 // pred_fallthru
        _
      %p336 = scmp.le.s32.totalorder 1, %s24
      %p337 = scmp.lt.s32.totalorder %s24, 3
      %p338 = pnand %p336, %p337
      %p339 = pneg %p338
      // Predicated region
      $region49: #{tpu_custom_call.1} parent=5 // pred_check
        _
      $region50: #{tpu_custom_call.1} parent=5 // pred_check_branch
        %341 = sbr.rel (%p338) target = $region52
      $region51: #{tpu_custom_call.1} parent=5 // pred_region
        %s342 = ssub.s32 %s24, 1
        // Predicated region
        $region53: #{tpu_custom_call.1} parent=51 // pred_check
          %p343 = pneg %p45
        $region54: #{tpu_custom_call.1} parent=51 // pred_check_branch
          %345 = sbr.rel (%p343) target = $region56
        $region55: #{tpu_custom_call.1} parent=51 // pred_region
          %346 = dma.done [#allocation5], 16
        $region56: #{tpu_custom_call.1} parent=51 // pred_fallthru
          _
        // Predicated region
        $region57: #{tpu_custom_call.1} parent=51 // pred_check
          %p347 = pneg %p66
        $region58: #{tpu_custom_call.1} parent=51 // pred_check_branch
          %349 = sbr.rel (%p347) target = $region60
        $region59: #{tpu_custom_call.1} parent=51 // pred_region
          %350 = dma.done [#allocation6], 16
        $region60: #{tpu_custom_call.1} parent=51 // pred_fallthru
          _
        // Predicated region
        $region61: #{tpu_custom_call.1} parent=51 // pred_check
          %p351 = pneg %p87
        $region62: #{tpu_custom_call.1} parent=51 // pred_check_branch
          %353 = sbr.rel (%p351) target = $region64
        $region63: #{tpu_custom_call.1} parent=51 // pred_region
          %354 = dma.done [#allocation9], 16
        $region64: #{tpu_custom_call.1} parent=51 // pred_fallthru
          _
        // Predicated region
        $region65: #{tpu_custom_call.1} parent=51 // pred_check
          %p355 = pneg %p108
        $region66: #{tpu_custom_call.1} parent=51 // pred_check_branch
          %357 = sbr.rel (%p355) target = $region68
        $region67: #{tpu_custom_call.1} parent=51 // pred_region
          %358 = dma.done [#allocation9], 16
        $region68: #{tpu_custom_call.1} parent=51 // pred_fallthru
          _
        // Predicated region
        $region69: #{tpu_custom_call.1} parent=51 // pred_check
          %p359 = pneg %p129
        $region70: #{tpu_custom_call.1} parent=51 // pred_check_branch
          %361 = sbr.rel (%p359) target = $region72
        $region71: #{tpu_custom_call.1} parent=51 // pred_region
          %362 = dma.done [#allocation12], 16
        $region72: #{tpu_custom_call.1} parent=51 // pred_fallthru
          _
        // Predicated region
        $region73: #{tpu_custom_call.1} parent=51 // pred_check
          %p363 = pneg %p150
        $region74: #{tpu_custom_call.1} parent=51 // pred_check_branch
          %365 = sbr.rel (%p363) target = $region76
        $region75: #{tpu_custom_call.1} parent=51 // pred_region
          %366 = dma.done [#allocation12], 16
        $region76: #{tpu_custom_call.1} parent=51 // pred_fallthru
          _
        %s367 = sand.u32 %s189, 1
        %s368 = scalar_lea.sflag [#allocation3], %s367
        %s369 = sand.u32 %s189, 1
        %s370 = smul.addr %s369, 8
        %s371 = scalar_lea.vmem [#allocation14], %s370
        // Predicated region
        $region77: #{tpu_custom_call.1} parent=51 // pred_check
          %p372 = pneg %p202
        $region78: #{tpu_custom_call.1} parent=51 // pred_check_branch
          %374 = sbr.rel (%p372) target = $region80
        $region79: #{tpu_custom_call.1} parent=51 // pred_region
          %375 = dma.done %s368, 128
        $region80: #{tpu_custom_call.1} parent=51 // pred_fallthru
          _
        %376 = sfence
        %p377 = pneg %p45
        %p378 = pneg %p42
        %p379 = pneg %p66
        %p380 = pneg %p63
        %p381 = pneg %p87
        %p382 = pneg %p84
        %p383 = pneg %p108
        %p384 = pneg %p105
        %p385 = pneg %p129
        %p386 = pneg %p126
        %p387 = pneg %p150
        %p388 = pneg %p147
        %p389 = scmp.lt.s32.totalorder %s29, 1
        %s390 = scalar_select %p389, %s29, 1
        %s391 = smul.addr %s390, 8
        %s392 = scalar_lea.vmem %s6, %s391
        %p393 = pneg %p176
        %p394 = pneg %p173
        %s395 = sand.u32 %s189, 1
        %s396 = scalar_lea.sflag [#allocation3], %s395
        %s397 = sand.u32 %s189, 1
        %s398 = smul.addr %s397, 8
        %s399 = scalar_lea.vmem [#allocation14], %s398
        %p400 = pneg %p202
        %p401 = pneg %p199
        %p402 = pneg %p228
        %p403 = pneg %p225
        %s404 = sand.u32 %s215, 1
        %s405 = scalar_lea.sflag [#allocation4], %s404
        %s406 = sand.u32 %s215, 1
        %s407 = smul.addr %s406, 8
        %s408 = scalar_lea.vmem [#allocation15], %s407
        %p409 = scmp.lt.s32.totalorder %s29, 1
        %s410 = scalar_select %p409, %s29, 1
        %s411 = smul.addr %s410, 8
        %s412 = scalar_lea.vmem %s6, %s411
        %v413 = vld [vmem:[%s412] sm:$0xff]
        %v414 = vld [vmem:[%s371] sm:$0xff]
        %s415 = sld [smem:[#allocation2]]
        %s416 = sld [smem:[#allocation2 + $0x1]]
        %v417 = vlog2.pop %v414
        %v418 = vmul.f32 %v417, 0.6931472
        %v419 = vstv %s415
        %v420 = vmul.f32 %v413, %v419
        %v421 = vmul.f32 %v413, %v420
        %v422 = vmul.f32 %v421, 0.5
        %v423 = vsub.f32 %v418, %v422
        %v424 = vmul.f32 %v414, %v414
        %v425 = vstv %s416
        %v426 = vmul.f32 %v424, %v425
        %v427 = vsub.f32 %v423, %v426
        %s428 = sld [smem:[#allocation7]]
        %v429 = vstv %s428
        %v430 = vmul.f32 %v420, %v429
        %s431 = sld [smem:[#allocation8]]
        %v432 = vstv %s431
        %v433 = vadd.f32 %v430, %v432
        %v434 = vadd.f32 %v418, %v433
        %s435 = sld [smem:[#allocation7 + $0x1]]
        %v436 = vstv %s435
        %v437 = vmul.f32 %v420, %v436
        %s438 = sld [smem:[#allocation8 + $0x1]]
        %v439 = vstv %s438
        %v440 = vadd.f32 %v437, %v439
        %v441 = vadd.f32 %v418, %v440
        %s442 = sld [smem:[#allocation7 + $0x2]]
        %v443 = vstv %s442
        %v444 = vmul.f32 %v420, %v443
        %s445 = sld [smem:[#allocation8 + $0x2]]
        %v446 = vstv %s445
        %v447 = vadd.f32 %v444, %v446
        %v448 = vadd.f32 %v418, %v447
        %s449 = sld [smem:[#allocation10]]
        %v450 = vstv %s449
        %v451 = vmul.f32 %v420, %v450
        %s452 = sld [smem:[#allocation13]]
        %v453 = vstv %s452
        %v454 = vadd.f32 %v451, %v453
        %s455 = sld [smem:[#allocation11]]
        %v456 = vstv %s455
        %v457 = vmul.f32 %v414, %v456
        %v458 = vadd.f32 %v454, %v457
        %v459 = vsub.f32 %v454, %v457
        %s460 = sld [smem:[#allocation10 + $0x1]]
        %v461 = vstv %s460
        %v462 = vmul.f32 %v420, %v461
        %s463 = sld [smem:[#allocation13 + $0x1]]
        %v464 = vstv %s463
        %v465 = vadd.f32 %v462, %v464
        %s466 = sld [smem:[#allocation11 + $0x1]]
        %v467 = vstv %s466
        %v468 = vmul.f32 %v414, %v467
        %v469 = vadd.f32 %v465, %v468
        %v470 = vsub.f32 %v465, %v468
        %s471 = sld [smem:[#allocation10 + $0x2]]
        %v472 = vstv %s471
        %v473 = vmul.f32 %v420, %v472
        %s474 = sld [smem:[#allocation13 + $0x2]]
        %v475 = vstv %s474
        %v476 = vadd.f32 %v473, %v475
        %s477 = sld [smem:[#allocation11 + $0x2]]
        %v478 = vstv %s477
        %v479 = vmul.f32 %v414, %v478
        %v480 = vadd.f32 %v476, %v479
        %v481 = vsub.f32 %v476, %v479
        %s482 = sld [smem:[#allocation10 + $0x3]]
        %v483 = vstv %s482
        %v484 = vmul.f32 %v420, %v483
        %s485 = sld [smem:[#allocation13 + $0x3]]
        %v486 = vstv %s485
        %v487 = vadd.f32 %v484, %v486
        %s488 = sld [smem:[#allocation11 + $0x3]]
        %v489 = vstv %s488
        %v490 = vmul.f32 %v414, %v489
        %v491 = vadd.f32 %v487, %v490
        %v492 = vsub.f32 %v487, %v490
        %s493 = sld [smem:[#allocation10 + $0x4]]
        %v494 = vstv %s493
        %v495 = vmul.f32 %v420, %v494
        %s496 = sld [smem:[#allocation13 + $0x4]]
        %v497 = vstv %s496
        %v498 = vadd.f32 %v495, %v497
        %s499 = sld [smem:[#allocation11 + $0x4]]
        %v500 = vstv %s499
        %v501 = vmul.f32 %v414, %v500
        %v502 = vadd.f32 %v498, %v501
        %v503 = vsub.f32 %v498, %v501
        %s504 = sld [smem:[#allocation10 + $0x5]]
        %v505 = vstv %s504
        %v506 = vmul.f32 %v420, %v505
        %s507 = sld [smem:[#allocation13 + $0x5]]
        %v508 = vstv %s507
        %v509 = vadd.f32 %v506, %v508
        %s510 = sld [smem:[#allocation11 + $0x5]]
        %v511 = vstv %s510
        %v512 = vmul.f32 %v414, %v511
        %v513 = vadd.f32 %v509, %v512
        %v514 = vsub.f32 %v509, %v512
        %s515 = sld [smem:[#allocation10 + $0x6]]
        %v516 = vstv %s515
        %v517 = vmul.f32 %v420, %v516
        %s518 = sld [smem:[#allocation13 + $0x6]]
        %v519 = vstv %s518
        %v520 = vadd.f32 %v517, %v519
        %s521 = sld [smem:[#allocation11 + $0x6]]
        %v522 = vstv %s521
        %v523 = vmul.f32 %v414, %v522
        %v524 = vadd.f32 %v520, %v523
        %v525 = vsub.f32 %v520, %v523
        %s526 = sld [smem:[#allocation10 + $0x7]]
        %v527 = vstv %s526
        %v528 = vmul.f32 %v420, %v527
        %s529 = sld [smem:[#allocation13 + $0x7]]
        %v530 = vstv %s529
        %v531 = vadd.f32 %v528, %v530
        %s532 = sld [smem:[#allocation11 + $0x7]]
        %v533 = vstv %s532
        %v534 = vmul.f32 %v414, %v533
        %v535 = vadd.f32 %v531, %v534
        %v536 = vsub.f32 %v531, %v534
        %v537 = vmax.f32 %v458, %v469
        %v538 = vmax.f32 %v537, %v480
        %v539 = vmax.f32 %v538, %v491
        %v540 = vmax.f32 %v539, %v502
        %v541 = vmax.f32 %v540, %v513
        %v542 = vmax.f32 %v541, %v524
        %v543 = vmax.f32 %v542, %v535
        %v544 = vsub.f32 %v458, %v543
        %v545 = vmul.f32 %v544, 1.442695
        %v546 = vpow.pop %v545
        %v547 = vsub.f32 %v459, %v543
        %v548 = vmul.f32 %v547, 1.442695
        %v549 = vpow.pop %v548
        %v550 = vsub.f32 %v546, %v549
        %v551 = vsub.f32 %v469, %v543
        %v552 = vmul.f32 %v551, 1.442695
        %v553 = vpow.pop %v552
        %v554 = vsub.f32 %v470, %v543
        %v555 = vmul.f32 %v554, 1.442695
        %v556 = vpow.pop %v555
        %v557 = vsub.f32 %v553, %v556
        %v558 = vadd.f32 %v550, %v557
        %v559 = vsub.f32 %v480, %v543
        %v560 = vmul.f32 %v559, 1.442695
        %v561 = vpow.pop %v560
        %v562 = vsub.f32 %v481, %v543
        %v563 = vmul.f32 %v562, 1.442695
        %v564 = vpow.pop %v563
        %v565 = vsub.f32 %v561, %v564
        %v566 = vadd.f32 %v558, %v565
        %v567 = vsub.f32 %v491, %v543
        %v568 = vmul.f32 %v567, 1.442695
        %v569 = vpow.pop %v568
        %v570 = vsub.f32 %v492, %v543
        %v571 = vmul.f32 %v570, 1.442695
        %v572 = vpow.pop %v571
        %v573 = vsub.f32 %v569, %v572
        %v574 = vadd.f32 %v566, %v573
        %v575 = vsub.f32 %v502, %v543
        %v576 = vmul.f32 %v575, 1.442695
        %v577 = vpow.pop %v576
        %v578 = vsub.f32 %v503, %v543
        %v579 = vmul.f32 %v578, 1.442695
        %v580 = vpow.pop %v579
        %v581 = vsub.f32 %v577, %v580
        %v582 = vadd.f32 %v574, %v581
        %v583 = vsub.f32 %v513, %v543
        %v584 = vmul.f32 %v583, 1.442695
        %v585 = vpow.pop %v584
        %v586 = vsub.f32 %v514, %v543
        %v587 = vmul.f32 %v586, 1.442695
        %v588 = vpow.pop %v587
        %v589 = vsub.f32 %v585, %v588
        %v590 = vadd.f32 %v582, %v589
        %v591 = vsub.f32 %v524, %v543
        %v592 = vmul.f32 %v591, 1.442695
        %v593 = vpow.pop %v592
        %v594 = vsub.f32 %v525, %v543
        %v595 = vmul.f32 %v594, 1.442695
        %v596 = vpow.pop %v595
        %v597 = vsub.f32 %v593, %v596
        %v598 = vadd.f32 %v590, %v597
        %v599 = vsub.f32 %v535, %v543
        %v600 = vmul.f32 %v599, 1.442695
        %v601 = vpow.pop %v600
        %v602 = vsub.f32 %v536, %v543
        %v603 = vmul.f32 %v602, 1.442695
        %v604 = vpow.pop %v603
        %v605 = vsub.f32 %v601, %v604
        %v606 = vadd.f32 %v598, %v605
        %s607 = sld [smem:[#allocation10 + $0x8]]
        %v608 = vstv %s607
        %v609 = vmul.f32 %v420, %v608
        %s610 = sld [smem:[#allocation13 + $0x8]]
        %v611 = vstv %s610
        %v612 = vadd.f32 %v609, %v611
        %s613 = sld [smem:[#allocation11 + $0x8]]
        %v614 = vstv %s613
        %v615 = vmul.f32 %v414, %v614
        %v616 = vadd.f32 %v612, %v615
        %v617 = vsub.f32 %v612, %v615
        %s618 = sld [smem:[#allocation10 + $0x9]]
        %v619 = vstv %s618
        %v620 = vmul.f32 %v420, %v619
        %s621 = sld [smem:[#allocation13 + $0x9]]
        %v622 = vstv %s621
        %v623 = vadd.f32 %v620, %v622
        %s624 = sld [smem:[#allocation11 + $0x9]]
        %v625 = vstv %s624
        %v626 = vmul.f32 %v414, %v625
        %v627 = vadd.f32 %v623, %v626
        %v628 = vsub.f32 %v623, %v626
        %s629 = sld [smem:[#allocation10 + $0xa]]
        %v630 = vstv %s629
        %v631 = vmul.f32 %v420, %v630
        %s632 = sld [smem:[#allocation13 + $0xa]]
        %v633 = vstv %s632
        %v634 = vadd.f32 %v631, %v633
        %s635 = sld [smem:[#allocation11 + $0xa]]
        %v636 = vstv %s635
        %v637 = vmul.f32 %v414, %v636
        %v638 = vadd.f32 %v634, %v637
        %v639 = vsub.f32 %v634, %v637
        %s640 = sld [smem:[#allocation10 + $0xb]]
        %v641 = vstv %s640
        %v642 = vmul.f32 %v420, %v641
        %s643 = sld [smem:[#allocation13 + $0xb]]
        %v644 = vstv %s643
        %v645 = vadd.f32 %v642, %v644
        %s646 = sld [smem:[#allocation11 + $0xb]]
        %v647 = vstv %s646
        %v648 = vmul.f32 %v414, %v647
        %v649 = vadd.f32 %v645, %v648
        %v650 = vsub.f32 %v645, %v648
        %s651 = sld [smem:[#allocation10 + $0xc]]
        %v652 = vstv %s651
        %v653 = vmul.f32 %v420, %v652
        %s654 = sld [smem:[#allocation13 + $0xc]]
        %v655 = vstv %s654
        %v656 = vadd.f32 %v653, %v655
        %s657 = sld [smem:[#allocation11 + $0xc]]
        %v658 = vstv %s657
        %v659 = vmul.f32 %v414, %v658
        %v660 = vadd.f32 %v656, %v659
        %v661 = vsub.f32 %v656, %v659
        %s662 = sld [smem:[#allocation10 + $0xd]]
        %v663 = vstv %s662
        %v664 = vmul.f32 %v420, %v663
        %s665 = sld [smem:[#allocation13 + $0xd]]
        %v666 = vstv %s665
        %v667 = vadd.f32 %v664, %v666
        %s668 = sld [smem:[#allocation11 + $0xd]]
        %v669 = vstv %s668
        %v670 = vmul.f32 %v414, %v669
        %v671 = vadd.f32 %v667, %v670
        %v672 = vsub.f32 %v667, %v670
        %s673 = sld [smem:[#allocation10 + $0xe]]
        %v674 = vstv %s673
        %v675 = vmul.f32 %v420, %v674
        %s676 = sld [smem:[#allocation13 + $0xe]]
        %v677 = vstv %s676
        %v678 = vadd.f32 %v675, %v677
        %s679 = sld [smem:[#allocation11 + $0xe]]
        %v680 = vstv %s679
        %v681 = vmul.f32 %v414, %v680
        %v682 = vadd.f32 %v678, %v681
        %v683 = vsub.f32 %v678, %v681
        %s684 = sld [smem:[#allocation10 + $0xf]]
        %v685 = vstv %s684
        %v686 = vmul.f32 %v420, %v685
        %s687 = sld [smem:[#allocation13 + $0xf]]
        %v688 = vstv %s687
        %v689 = vadd.f32 %v686, %v688
        %s690 = sld [smem:[#allocation11 + $0xf]]
        %v691 = vstv %s690
        %v692 = vmul.f32 %v414, %v691
        %v693 = vadd.f32 %v689, %v692
        %v694 = vsub.f32 %v689, %v692
        %v695 = vmax.f32 %v616, %v627
        %v696 = vmax.f32 %v695, %v638
        %v697 = vmax.f32 %v696, %v649
        %v698 = vmax.f32 %v697, %v660
        %v699 = vmax.f32 %v698, %v671
        %v700 = vmax.f32 %v699, %v682
        %v701 = vmax.f32 %v700, %v693
        %v702 = vsub.f32 %v616, %v701
        %v703 = vmul.f32 %v702, 1.442695
        %v704 = vpow.pop %v703
        %v705 = vsub.f32 %v617, %v701
        %v706 = vmul.f32 %v705, 1.442695
        %v707 = vpow.pop %v706
        %v708 = vsub.f32 %v704, %v707
        %v709 = vsub.f32 %v627, %v701
        %v710 = vmul.f32 %v709, 1.442695
        %v711 = vpow.pop %v710
        %v712 = vsub.f32 %v628, %v701
        %v713 = vmul.f32 %v712, 1.442695
        %v714 = vpow.pop %v713
        %v715 = vsub.f32 %v711, %v714
        %v716 = vadd.f32 %v708, %v715
        %v717 = vsub.f32 %v638, %v701
        %v718 = vmul.f32 %v717, 1.442695
        %v719 = vpow.pop %v718
        %v720 = vsub.f32 %v639, %v701
        %v721 = vmul.f32 %v720, 1.442695
        %v722 = vpow.pop %v721
        %v723 = vsub.f32 %v719, %v722
        %v724 = vadd.f32 %v716, %v723
        %v725 = vsub.f32 %v649, %v701
        %v726 = vmul.f32 %v725, 1.442695
        %v727 = vpow.pop %v726
        %v728 = vsub.f32 %v650, %v701
        %v729 = vmul.f32 %v728, 1.442695
        %v730 = vpow.pop %v729
        %v731 = vsub.f32 %v727, %v730
        %v732 = vadd.f32 %v724, %v731
        %v733 = vsub.f32 %v660, %v701
        %v734 = vmul.f32 %v733, 1.442695
        %v735 = vpow.pop %v734
        %v736 = vsub.f32 %v661, %v701
        %v737 = vmul.f32 %v736, 1.442695
        %v738 = vpow.pop %v737
        %v739 = vsub.f32 %v735, %v738
        %v740 = vadd.f32 %v732, %v739
        %v741 = vsub.f32 %v671, %v701
        %v742 = vmul.f32 %v741, 1.442695
        %v743 = vpow.pop %v742
        %v744 = vsub.f32 %v672, %v701
        %v745 = vmul.f32 %v744, 1.442695
        %v746 = vpow.pop %v745
        %v747 = vsub.f32 %v743, %v746
        %v748 = vadd.f32 %v740, %v747
        %v749 = vsub.f32 %v682, %v701
        %v750 = vmul.f32 %v749, 1.442695
        %v751 = vpow.pop %v750
        %v752 = vsub.f32 %v683, %v701
        %v753 = vmul.f32 %v752, 1.442695
        %v754 = vpow.pop %v753
        %v755 = vsub.f32 %v751, %v754
        %v756 = vadd.f32 %v748, %v755
        %v757 = vsub.f32 %v693, %v701
        %v758 = vmul.f32 %v757, 1.442695
        %v759 = vpow.pop %v758
        %v760 = vsub.f32 %v694, %v701
        %v761 = vmul.f32 %v760, 1.442695
        %v762 = vpow.pop %v761
        %v763 = vsub.f32 %v759, %v762
        %v764 = vadd.f32 %v756, %v763
        %s765 = sld [smem:[#allocation10 + $0x10]]
        %v766 = vstv %s765
        %v767 = vmul.f32 %v420, %v766
        %s768 = sld [smem:[#allocation13 + $0x10]]
        %v769 = vstv %s768
        %v770 = vadd.f32 %v767, %v769
        %s771 = sld [smem:[#allocation11 + $0x10]]
        %v772 = vstv %s771
        %v773 = vmul.f32 %v414, %v772
        %v774 = vadd.f32 %v770, %v773
        %v775 = vsub.f32 %v770, %v773
        %s776 = sld [smem:[#allocation10 + $0x11]]
        %v777 = vstv %s776
        %v778 = vmul.f32 %v420, %v777
        %s779 = sld [smem:[#allocation13 + $0x11]]
        %v780 = vstv %s779
        %v781 = vadd.f32 %v778, %v780
        %s782 = sld [smem:[#allocation11 + $0x11]]
        %v783 = vstv %s782
        %v784 = vmul.f32 %v414, %v783
        %v785 = vadd.f32 %v781, %v784
        %v786 = vsub.f32 %v781, %v784
        %s787 = sld [smem:[#allocation10 + $0x12]]
        %v788 = vstv %s787
        %v789 = vmul.f32 %v420, %v788
        %s790 = sld [smem:[#allocation13 + $0x12]]
        %v791 = vstv %s790
        %v792 = vadd.f32 %v789, %v791
        %s793 = sld [smem:[#allocation11 + $0x12]]
        %v794 = vstv %s793
        %v795 = vmul.f32 %v414, %v794
        %v796 = vadd.f32 %v792, %v795
        %v797 = vsub.f32 %v792, %v795
        %s798 = sld [smem:[#allocation10 + $0x13]]
        %v799 = vstv %s798
        %v800 = vmul.f32 %v420, %v799
        %s801 = sld [smem:[#allocation13 + $0x13]]
        %v802 = vstv %s801
        %v803 = vadd.f32 %v800, %v802
        %s804 = sld [smem:[#allocation11 + $0x13]]
        %v805 = vstv %s804
        %v806 = vmul.f32 %v414, %v805
        %v807 = vadd.f32 %v803, %v806
        %v808 = vsub.f32 %v803, %v806
        %s809 = sld [smem:[#allocation10 + $0x14]]
        %v810 = vstv %s809
        %v811 = vmul.f32 %v420, %v810
        %s812 = sld [smem:[#allocation13 + $0x14]]
        %v813 = vstv %s812
        %v814 = vadd.f32 %v811, %v813
        %s815 = sld [smem:[#allocation11 + $0x14]]
        %v816 = vstv %s815
        %v817 = vmul.f32 %v414, %v816
        %v818 = vadd.f32 %v814, %v817
        %v819 = vsub.f32 %v814, %v817
        %s820 = sld [smem:[#allocation10 + $0x15]]
        %v821 = vstv %s820
        %v822 = vmul.f32 %v420, %v821
        %s823 = sld [smem:[#allocation13 + $0x15]]
        %v824 = vstv %s823
        %v825 = vadd.f32 %v822, %v824
        %s826 = sld [smem:[#allocation11 + $0x15]]
        %v827 = vstv %s826
        %v828 = vmul.f32 %v414, %v827
        %v829 = vadd.f32 %v825, %v828
        %v830 = vsub.f32 %v825, %v828
        %s831 = sld [smem:[#allocation10 + $0x16]]
        %v832 = vstv %s831
        %v833 = vmul.f32 %v420, %v832
        %s834 = sld [smem:[#allocation13 + $0x16]]
        %v835 = vstv %s834
        %v836 = vadd.f32 %v833, %v835
        %s837 = sld [smem:[#allocation11 + $0x16]]
        %v838 = vstv %s837
        %v839 = vmul.f32 %v414, %v838
        %v840 = vadd.f32 %v836, %v839
        %v841 = vsub.f32 %v836, %v839
        %s842 = sld [smem:[#allocation10 + $0x17]]
        %v843 = vstv %s842
        %v844 = vmul.f32 %v420, %v843
        %s845 = sld [smem:[#allocation13 + $0x17]]
        %v846 = vstv %s845
        %v847 = vadd.f32 %v844, %v846
        %s848 = sld [smem:[#allocation11 + $0x17]]
        %v849 = vstv %s848
        %v850 = vmul.f32 %v414, %v849
        %v851 = vadd.f32 %v847, %v850
        %v852 = vsub.f32 %v847, %v850
        %v853 = vmax.f32 %v774, %v785
        %v854 = vmax.f32 %v853, %v796
        %v855 = vmax.f32 %v854, %v807
        %v856 = vmax.f32 %v855, %v818
        %v857 = vmax.f32 %v856, %v829
        %v858 = vmax.f32 %v857, %v840
        %v859 = vmax.f32 %v858, %v851
        %v860 = vsub.f32 %v774, %v859
        %v861 = vmul.f32 %v860, 1.442695
        %v862 = vpow.pop %v861
        %v863 = vsub.f32 %v775, %v859
        %v864 = vmul.f32 %v863, 1.442695
        %v865 = vpow.pop %v864
        %v866 = vsub.f32 %v862, %v865
        %v867 = vsub.f32 %v785, %v859
        %v868 = vmul.f32 %v867, 1.442695
        %v869 = vpow.pop %v868
        %v870 = vsub.f32 %v786, %v859
        %v871 = vmul.f32 %v870, 1.442695
        %v872 = vpow.pop %v871
        %v873 = vsub.f32 %v869, %v872
        %v874 = vadd.f32 %v866, %v873
        %v875 = vsub.f32 %v796, %v859
        %v876 = vmul.f32 %v875, 1.442695
        %v877 = vpow.pop %v876
        %v878 = vsub.f32 %v797, %v859
        %v879 = vmul.f32 %v878, 1.442695
        %v880 = vpow.pop %v879
        %v881 = vsub.f32 %v877, %v880
        %v882 = vadd.f32 %v874, %v881
        %v883 = vsub.f32 %v807, %v859
        %v884 = vmul.f32 %v883, 1.442695
        %v885 = vpow.pop %v884
        %v886 = vsub.f32 %v808, %v859
        %v887 = vmul.f32 %v886, 1.442695
        %v888 = vpow.pop %v887
        %v889 = vsub.f32 %v885, %v888
        %v890 = vadd.f32 %v882, %v889
        %v891 = vsub.f32 %v818, %v859
        %v892 = vmul.f32 %v891, 1.442695
        %v893 = vpow.pop %v892
        %v894 = vsub.f32 %v819, %v859
        %v895 = vmul.f32 %v894, 1.442695
        %v896 = vpow.pop %v895
        %v897 = vsub.f32 %v893, %v896
        %v898 = vadd.f32 %v890, %v897
        %v899 = vsub.f32 %v829, %v859
        %v900 = vmul.f32 %v899, 1.442695
        %v901 = vpow.pop %v900
        %v902 = vsub.f32 %v830, %v859
        %v903 = vmul.f32 %v902, 1.442695
        %v904 = vpow.pop %v903
        %v905 = vsub.f32 %v901, %v904
        %v906 = vadd.f32 %v898, %v905
        %v907 = vsub.f32 %v840, %v859
        %v908 = vmul.f32 %v907, 1.442695
        %v909 = vpow.pop %v908
        %v910 = vsub.f32 %v841, %v859
        %v911 = vmul.f32 %v910, 1.442695
        %v912 = vpow.pop %v911
        %v913 = vsub.f32 %v909, %v912
        %v914 = vadd.f32 %v906, %v913
        %v915 = vsub.f32 %v851, %v859
        %v916 = vmul.f32 %v915, 1.442695
        %v917 = vpow.pop %v916
        %v918 = vsub.f32 %v852, %v859
        %v919 = vmul.f32 %v918, 1.442695
        %v920 = vpow.pop %v919
        %v921 = vsub.f32 %v917, %v920
        %v922 = vadd.f32 %v914, %v921
        %v923 = vmax.f32 %v434, %v441
        %v924 = vmax.f32 %v923, %v448
        %v925 = vmax.f32 %v924, %v543
        %v926 = vmax.f32 %v925, %v701
        %v927 = vmax.f32 %v926, %v859
        %v928 = vsub.f32 %v434, %v927
        %v929 = vmul.f32 %v928, 1.442695
        %v930 = vpow.pop %v929
        %v931 = vsub.f32 %v441, %v927
        %v932 = vmul.f32 %v931, 1.442695
        %v933 = vpow.pop %v932
        %v934 = vadd.f32 %v930, %v933
        %v935 = vsub.f32 %v448, %v927
        %v936 = vmul.f32 %v935, 1.442695
        %v937 = vpow.pop %v936
        %v938 = vadd.f32 %v934, %v937
        %v939 = vsub.f32 %v543, %v927
        %v940 = vmul.f32 %v939, 1.442695
        %v941 = vpow.pop %v940
        %v942 = vmul.f32 %v606, %v941
        %v943 = vadd.f32 %v938, %v942
        %v944 = vsub.f32 %v701, %v927
        %v945 = vmul.f32 %v944, 1.442695
        %v946 = vpow.pop %v945
        %v947 = vmul.f32 %v764, %v946
        %v948 = vadd.f32 %v943, %v947
        %v949 = vsub.f32 %v859, %v927
        %v950 = vmul.f32 %v949, 1.442695
        %v951 = vpow.pop %v950
        %v952 = vmul.f32 %v922, %v951
        %v953 = vadd.f32 %v948, %v952
        %v954 = vadd.f32 %v427, %v927
        %v955 = vlog2.pop %v953
        %v956 = vmul.f32 %v955, 0.6931472
        %v957 = vadd.f32 %v954, %v956
        %958 = vst [vmem:[%s408] sm:$0xff] %v957
        %s959 = sand.u32 %s215, 1
        %s960 = scalar_lea.sflag [#allocation4], %s959
        %s961 = sand.u32 %s215, 1
        %s962 = smul.addr %s961, 8
        %s963 = scalar_lea.vmem [#allocation15], %s962
        // Predicated region
        $region81: #{tpu_custom_call.1} parent=51 // pred_check
          %p964 = pneg %p225
        $region82: #{tpu_custom_call.1} parent=51 // pred_check_branch
          %966 = sbr.rel (%p964) target = $region84
        $region83: #{tpu_custom_call.1} parent=51 // pred_region
          %s968 = ssub.s32 128, 128
          %969 = vsyncadd %s960, %s968
          %s970 = smul.addr %s29, 128
          %s971 = scalar_lea.hbm %s8, %s970
          %s973 = sshll.u32 %s963, 4
          %s974 = int_to_ptr.vmem [resolvable:$true] %s973
          %976 = dma.vmem_to_hbm [thread:$0]  %s974, 128, %s971, %s960
        $region84: #{tpu_custom_call.1} parent=51 // pred_fallthru
          _
      $region52: #{tpu_custom_call.1} parent=5 // pred_fallthru
        _
      %p977 = scmp.le.s32.totalorder 2, %s24
      // Predicated region
      $region85: #{tpu_custom_call.1} parent=5 // pred_check
        %p978 = pneg %p977
      $region86: #{tpu_custom_call.1} parent=5 // pred_check_branch
        %980 = sbr.rel (%p978) target = $region88
      $region87: #{tpu_custom_call.1} parent=5 // pred_region
        %s981 = ssub.s32 %s24, 2
        // Predicated region
        $region89: #{tpu_custom_call.1} parent=87 // pred_check
          %p982 = pneg %p231
        $region90: #{tpu_custom_call.1} parent=87 // pred_check_branch
          %984 = sbr.rel (%p982) target = $region92
        $region91: #{tpu_custom_call.1} parent=87 // pred_region
          %s985 = sand.u32 %s216, 1
          %s986 = scalar_lea.sflag [#allocation4], %s985
          %s987 = sand.u32 %s216, 1
          %s988 = smul.addr %s987, 8
          %s989 = scalar_lea.vmem [#allocation15], %s988
          %990 = dma.done %s986, 128
        $region92: #{tpu_custom_call.1} parent=87 // pred_fallthru
          _
      $region88: #{tpu_custom_call.1} parent=5 // pred_fallthru
        _
    $region6: #{tpu_custom_call.1} parent=1 // loop_footer
      %s28 = sadd.s32 1, %s24
    $region7: #{tpu_custom_call.1} parent=1 // loop_footer_branch
      %23 = sbr.rel target = $region3
    $region8: #{tpu_custom_call.1} parent=1 // loop_exit
      _
    %991 = vsyncpa [#allocation3], 1
    %s992 = scalar_lea.sflag [#allocation3], 1
    %993 = vsyncpa %s992, 1
    %994 = vsyncpa [#allocation4], 1
    %s995 = scalar_lea.sflag [#allocation4], 1
    %996 = vsyncpa %s995, 1
    %997 = vsyncpa [#allocation5], 1
    %s998 = scalar_lea.sflag [#allocation5], 1
    %999 = vsyncpa %s998, 1
    %1000 = vsyncpa [#allocation6], 1
    %s1001 = scalar_lea.sflag [#allocation6], 1
    %1002 = vsyncpa %s1001, 1
    %1003 = vsyncpa [#allocation9], 1
    %1004 = vsyncpa [#allocation12], 1

</llo_original>
